<compile_context>
chip_gen: v7x
topology: tpu7x:2x2x1
jax: 0.10.0
libtpu: 0.0.40
codegen_flags: <defaults>
</compile_context>

<pallas_src>
import jax
import jax.numpy as jnp
from jax.experimental import pallas as pl
from jax.experimental.pallas import tpu as pltpu


def attn_net_kernel(x_ref, w1_ref, b1_ref, w2_ref, b2_ref, a_ref):
    # Resident weights (constant index_map): fetched once, reused every grid step.
    w1 = w1_ref[...]                                    # (L, D)
    x = x_ref[...].astype(w1.dtype)                     # (block_n, L), match MXU dtype

    # Linear(L, D) + tanh, f32 accumulation regardless of weight dtype.
    h = jnp.dot(x, w1, preferred_element_type=jnp.float32)
    h = jnp.tanh(h + b1_ref[...].astype(jnp.float32))   # (block_n, D), f32 (v5e-safe)

    # Linear(D, 1): width-1 output -> VPU multiply + lane reduce (keeps MXU free,
    # avoids lane-padding the (D, 1) weight).
    w2 = w2_ref[...].astype(jnp.float32)                # (1, D) row == PyTorch weight
    att = jnp.sum(h * w2, axis=-1, keepdims=True)       # (block_n, 1)
    a_ref[...] = (att + b2_ref[...].astype(jnp.float32)).astype(a_ref.dtype)


def attn_net_forward(x, params, *, block_n=128):
    """Attn_Net forward. Returns (A, x) like the PyTorch module.

    params:
      w1: (L, D)  -- Linear(L, D).weight transposed
      b1: (1, D)
      w2: (1, D)  -- Linear(D, 1).weight (n_classes == 1)
      b2: (1, 1)
    w1 / w2 may be bf16; biases stay f32.
    """
    N, L = x.shape
    D = params["w1"].shape[1]
    C = params["b2"].shape[1]
    assert C == 1  # TODO(synk): n_classes > 1 would use an MXU matmul for the 2nd Linear.
    block_n = min(block_n, N)
    grid = (pl.cdiv(N, block_n),)

    a = pl.pallas_call(
        attn_net_kernel,
        out_shape=jax.ShapeDtypeStruct((N, C), jnp.float32),
        grid=grid,
        in_specs=[
            pl.BlockSpec((block_n, L), lambda i: (i, 0)),   # streamed x tiles
            pl.BlockSpec((L, D), lambda i: (0, 0)),          # resident w1
            pl.BlockSpec((1, D), lambda i: (0, 0)),          # resident b1
            pl.BlockSpec((1, D), lambda i: (0, 0)),          # resident w2 row
            pl.BlockSpec((1, 1), lambda i: (0, 0)),          # resident b2
        ],
        out_specs=pl.BlockSpec((block_n, C), lambda i: (i, 0)),
        compiler_params=pltpu.CompilerParams(
            dimension_semantics=("parallel",),               # rows are independent
            vmem_limit_bytes=32 * 1024 * 1024,
        ),
    )(x, params["w1"], params["b1"], params["w2"], params["b2"])
    # The module returns the input unchanged alongside the attention scores.
    return a, x


def reference_forward(x, params):
    w1 = params["w1"].astype(jnp.float32)
    w2 = params["w2"].astype(jnp.float32)
    h = jnp.tanh(x @ w1 + params["b1"])
    a = h @ w2.T + params["b2"]
    return a, x


if __name__ == "__main__":
    # Small shapes consistent with the module defaults: L=1024, D=256, n_classes=1.
    N, L, D, C = 512, 1024, 256, 1
    block_n = 128

    key = jax.random.PRNGKey(0)
    ks = jax.random.split(key, 5)
    scale = 0.02
    x = jax.random.normal(ks[0], (N, L), jnp.float32)
    params_f32 = {
        "w1": jax.random.normal(ks[1], (L, D), jnp.float32) * scale,
        "b1": jax.random.normal(ks[2], (1, D), jnp.float32) * scale,
        "w2": jax.random.normal(ks[3], (1, D), jnp.float32) * scale,
        "b2": jax.random.normal(ks[4], (1, 1), jnp.float32) * scale,
    }

    # f32 weights: tight check against the pure-JAX reference.
    a, x_out = attn_net_forward(x, params_f32, block_n=block_n)
    jax.block_until_ready((a, x_out))
    a_ref, _ = reference_forward(x, params_f32)
    assert a.shape == (N, C) and x_out.shape == (N, L)
    assert x_out is x  # identity pass-through, same as the PyTorch module
    assert jnp.allclose(a, a_ref, rtol=1e-3, atol=1e-4)

    # bf16 weights (halves weight HBM traffic, doubles MXU rate); f32 accumulation.
    params_bf16 = {k: (v.astype(jnp.bfloat16) if k in ("w1", "w2") else v)
                   for k, v in params_f32.items()}
    a_bf16, _ = attn_net_forward(x, params_bf16, block_n=block_n)
    jax.block_until_ready(a_bf16)
    assert jnp.allclose(a_bf16.astype(jnp.float32), a_ref, rtol=5e-2, atol=1e-2)

    print("KERNEL_OK")
</pallas_src>

<mosaic_0001>
module attributes {stable_mosaic.version = 11 : i64} {
  func.func @attn_net_kernel(%arg0: i32, %arg1: memref<128x1024xf32, #tpu.memory_space<vmem>>, %arg2: memref<1024x256xf32, #tpu.memory_space<vmem>>, %arg3: memref<1x256xf32, #tpu.memory_space<vmem>>, %arg4: memref<1x256xf32, #tpu.memory_space<vmem>>, %arg5: memref<1x1xf32, #tpu.memory_space<vmem>>, %arg6: memref<128x1xf32, #tpu.memory_space<vmem>>) attributes {dimension_semantics = [#tpu.dimension_semantics<parallel>], iteration_bounds = array<i64: 4>, scalar_prefetch = 0 : i64, scratch_operands = 0 : i64, tpu.core_type = #tpu.core_type<tc>, window_params = [{transform_indices = @transform_0, window_bounds = array<i64: 128, 1024>}, {pipeline_mode = #tpu.pipeline_mode<synchronous>, transform_indices = @transform_1, window_bounds = array<i64: 1024, 256>}, {pipeline_mode = #tpu.pipeline_mode<synchronous>, transform_indices = @transform_2, window_bounds = array<i64: 1, 256>}, {pipeline_mode = #tpu.pipeline_mode<synchronous>, transform_indices = @transform_3, window_bounds = array<i64: 1, 256>}, {pipeline_mode = #tpu.pipeline_mode<synchronous>, transform_indices = @transform_4, window_bounds = array<i64: 1, 1>}, {transform_indices = @transform_5, window_bounds = array<i64: 128, 1>}]} {
    %c0 = arith.constant 0 : index
    %c0_0 = arith.constant 0 : index
    %0 = vector.load %arg2[%c0, %c0_0] : memref<1024x256xf32, #tpu.memory_space<vmem>>, vector<1024x256xf32>
    %c0_1 = arith.constant 0 : index
    %c0_2 = arith.constant 0 : index
    %1 = vector.load %arg1[%c0_1, %c0_2] : memref<128x1024xf32, #tpu.memory_space<vmem>>, vector<128x1024xf32>
    %cst = arith.constant dense<0.000000e+00> : vector<128x256xf32>
    %2 = tpu.matmul %1, %0, %cst {dimension_numbers = #tpu.dot_dimension_numbers<[1], [0], [0], [1], [0, 0, 1, 1], [], []>} : vector<128x1024xf32>, vector<1024x256xf32>, vector<128x256xf32> -> vector<128x256xf32>
    %c0_3 = arith.constant 0 : index
    %c0_4 = arith.constant 0 : index
    %3 = vector.load %arg3[%c0_3, %c0_4] : memref<1x256xf32, #tpu.memory_space<vmem>>, vector<1x256xf32>
    %4 = vector.broadcast %3 : vector<1x256xf32> to vector<128x256xf32>
    %5 = arith.addf %2, %4 : vector<128x256xf32>
    %6 = math.tanh %5 : vector<128x256xf32>
    %c0_5 = arith.constant 0 : index
    %c0_6 = arith.constant 0 : index
    %7 = vector.load %arg4[%c0_5, %c0_6] : memref<1x256xf32, #tpu.memory_space<vmem>>, vector<1x256xf32>
    %8 = vector.broadcast %7 : vector<1x256xf32> to vector<128x256xf32>
    %9 = arith.mulf %6, %8 : vector<128x256xf32>
    %cst_7 = arith.constant dense<0.000000e+00> : vector<128xf32>
    %10 = vector.multi_reduction <add>, %9, %cst_7 [1] : vector<128x256xf32> to vector<128xf32>
    %11 = vector.shape_cast %10 : vector<128xf32> to vector<128x1xf32>
    %c0_8 = arith.constant 0 : index
    %c0_9 = arith.constant 0 : index
    %12 = vector.load %arg5[%c0_8, %c0_9] : memref<1x1xf32, #tpu.memory_space<vmem>>, vector<1x1xf32>
    %13 = vector.broadcast %12 : vector<1x1xf32> to vector<128x1xf32>
    %14 = arith.addf %11, %13 : vector<128x1xf32>
    %c0_10 = arith.constant 0 : index
    %c0_11 = arith.constant 0 : index
    %15 = vector.load %arg6[%c0_10, %c0_11] : memref<128x1xf32, #tpu.memory_space<vmem>>, vector<128x1xf32>
    tpu.vector_store %arg6[%c0_10, %c0_11], %14 {strides = array<i32>} : memref<128x1xf32, #tpu.memory_space<vmem>>, vector<128x1xf32>,
    return
  }
  func.func @transform_0(%arg0: i32) -> (i32, i32) {
    %c0_i32 = arith.constant 0 : i32
    %c0_i32_0 = arith.constant 0 : i32
    return %arg0, %c0_i32 : i32, i32
  }
  func.func @transform_1(%arg0: i32) -> (i32, i32) {
    %c0_i32 = arith.constant 0 : i32
    %c0_i32_0 = arith.constant 0 : i32
    %c0_i32_1 = arith.constant 0 : i32
    return %c0_i32, %c0_i32_0 : i32, i32
  }
  func.func @transform_2(%arg0: i32) -> (i32, i32) {
    %c0_i32 = arith.constant 0 : i32
    %c0_i32_0 = arith.constant 0 : i32
    %c0_i32_1 = arith.constant 0 : i32
    return %c0_i32, %c0_i32_0 : i32, i32
  }
  func.func @transform_3(%arg0: i32) -> (i32, i32) {
    %c0_i32 = arith.constant 0 : i32
    %c0_i32_0 = arith.constant 0 : i32
    %c0_i32_1 = arith.constant 0 : i32
    return %c0_i32, %c0_i32_0 : i32, i32
  }
  func.func @transform_4(%arg0: i32) -> (i32, i32) {
    %c0_i32 = arith.constant 0 : i32
    %c0_i32_0 = arith.constant 0 : i32
    %c0_i32_1 = arith.constant 0 : i32
    return %c0_i32, %c0_i32_0 : i32, i32
  }
  func.func @transform_5(%arg0: i32) -> (i32, i32) {
    %c0_i32 = arith.constant 0 : i32
    %c0_i32_0 = arith.constant 0 : i32
    return %arg0, %c0_i32 : i32, i32
  }
}

</mosaic_0001>

<llo_original>
// kernel: tpu_custom_call.1
$region0: #{tpu_custom_call.1}
  #allocation0 [shape = 'u32[]', space=smem, size = 0x4, offset = 0x4, fixed_abs, tag = 'smem constant byte address 0x4 - core index']
  #allocation1 [shape = 'u32[144,128]{1,0:T(1,128)}', space=vmem, size = 0x12000, scoped, tag = 'internal scratch']
  #allocation2 [shape = 'f32[1,1]{1,0:T(1,128)S(1)}', space=vmem, size = 0x200, scoped, tag = 'scoped memory for tpu_custom_call.1']
  %s0 = inlined_call_operand.hbm [shape: f32[512,1024], index: 0, kind: input, shape index: {}]
  %s1 = inlined_call_operand.hbm [shape: f32[1024,256], index: 1, kind: input, shape index: {}]
  %s2 = inlined_call_operand.hbm [shape: f32[1,256], index: 2, kind: input, shape index: {}]
  %s3 = inlined_call_operand.hbm [shape: f32[1,256], index: 3, kind: input, shape index: {}]
  %s4 = inlined_call_operand.<no memory space> [shape: f32[1,1], index: 4, kind: input, shape index: {}]
  %s5 = inlined_call_operand.vmem [shape: f32[512,1], index: 5, kind: output, shape index: {}]
  %s6 = sld [smem:[#allocation0]]
  $region69: #{tpu_custom_call.1} parent=0
    _
  %s8 = ssub.s32 1, %s6
  %s9 = scalar_select 0, %s8, %s6
  %v10 = vstv %s4
  %11 = vst [vmem:[#allocation2] sm:$0x1] %v10
  $region1: #{tpu_custom_call.1} parent=0
    #allocation3 [shape = 'u8[1048576]{0}', space=vmem, size = 0x100000, scoped, tag = 'input window, operand 0']
    #allocation4 [shape = 's32[2]{0}', space=sflag, size = 0x8, scoped, tag = 'scoped memory for tpu_custom_call.1']
    #allocation5 [shape = 'u8[1048576]{0}', space=vmem, size = 0x100000, scoped, tag = 'input window, operand 1, single buffered']
    #allocation6 [shape = 's32[1]{0}', space=sflag, size = 0x4, scoped, tag = 'scoped memory for tpu_custom_call.1']
    #allocation7 [shape = 'u8[1024]{0}', space=vmem, size = 0x400, scoped, tag = 'input window, operand 2, single buffered']
    #allocation8 [shape = 'u8[1024]{0}', space=vmem, size = 0x400, scoped, tag = 'input window, operand 3, single buffered']
    #allocation9 [shape = 's32[1]{0}', space=sflag, size = 0x4, scoped, tag = 'scoped memory for tpu_custom_call.1']
    %12 = vsyncpa [#allocation4], 0
    %s13 = scalar_lea.sflag [#allocation4], 1
    %14 = vsyncpa %s13, 0
    %15 = vsyncpa [#allocation6], 0
    %16 = vsyncpa [#allocation9], 0
    loop: start=0, step=1, limit=6
    $region2: #{tpu_custom_call.1} parent=1 // loop_pre_header
      _
    $region3: #{tpu_custom_call.1} parent=1 // loop_header
      %s18 = sphi 0, %s22
      %p19 = scmp.ge.s32.totalorder %s18, 6
      %s28 = sphi 0, %s30
      %s31 = sphi 0, %s28
      %s32 = sphi 0, %s31
      %s48 = sphi 0, %s32
      %s52 = sphi 0, %s52
      %s54 = sphi 0, %s52
      %s55 = sphi 0, %s54
      %s69 = sphi 0, %s55
      %s73 = sphi 0, %s73
      %s75 = sphi 0, %s73
      %s76 = sphi 0, %s75
      %s90 = sphi 0, %s76
      %s94 = sphi 0, %s94
      %s96 = sphi 0, %s94
      %s97 = sphi 0, %s96
      %s111 = sphi 0, %s97
      %s115 = sphi 0, %s115
      %s117 = sphi 0, %s115
      %s118 = sphi 0, %s117
      %s132 = sphi 0, %s118
      %s138 = sphi 0, %s140
      %s141 = sphi 0, %s138
      %s142 = sphi 0, %s141
      %s158 = sphi 0, %s142
    $region4: #{tpu_custom_call.1} parent=1 // loop_header_branch
      %21 = sbr.rel (%p19) target = $region8
    $region5: #{tpu_custom_call.1} parent=1 // loop_body
      %s23 = ssub.s32 %s18, 1
      %s24 = ssub.s32 %s18, 2
      %s25 = sadd.s32 %s18, 1
      %s26 = ssub.s32 %s18, %s25
      %p27 = scmp.eq.s32.totalorder %s26, 0
      %s29 = sadd.s32 %s28, 1
      %s30 = scalar_select %p27, %s28, %s29
      %p33 = pneg %p27
      %p34 = scmp.eq.s32.totalorder %s18, 3
      %p35 = por %p33, %p34
      %p36 = scmp.ne.s32.totalorder %s28, %s31
      %p37 = scmp.eq.s32.totalorder %s18, 0
      %p38 = por %p36, %p37
      %p39 = scmp.ne.s32.totalorder %s28, %s31
      %p40 = scmp.eq.s32.totalorder %s23, 3
      %p41 = por %p39, %p40
      %p42 = scmp.ne.s32.totalorder %s31, %s32
      %p43 = scmp.eq.s32.totalorder %s23, 0
      %p44 = por %p42, %p43
      %p45 = scmp.ne.s32.totalorder %s31, %s32
      %p46 = scmp.eq.s32.totalorder %s24, 3
      %p47 = por %p45, %p46
      %p49 = scmp.ne.s32.totalorder %s32, %s48
      %p50 = scmp.eq.s32.totalorder %s24, 0
      %p51 = por %p49, %p50
      %s53 = sadd.s32 %s52, 1
      %p56 = scmp.eq.s32.totalorder %s18, 3
      %p57 = scmp.ne.s32.totalorder %s52, %s54
      %p58 = scmp.eq.s32.totalorder %s18, 0
      %p59 = por %p57, %p58
      %p60 = scmp.ne.s32.totalorder %s52, %s54
      %p61 = scmp.eq.s32.totalorder %s23, 3
      %p62 = por %p60, %p61
      %p63 = scmp.ne.s32.totalorder %s54, %s55
      %p64 = scmp.eq.s32.totalorder %s23, 0
      %p65 = por %p63, %p64
      %p66 = scmp.ne.s32.totalorder %s54, %s55
      %p67 = scmp.eq.s32.totalorder %s24, 3
      %p68 = por %p66, %p67
      %p70 = scmp.ne.s32.totalorder %s55, %s69
      %p71 = scmp.eq.s32.totalorder %s24, 0
      %p72 = por %p70, %p71
      %s74 = sadd.s32 %s73, 1
      %p77 = scmp.eq.s32.totalorder %s18, 3
      %p78 = scmp.ne.s32.totalorder %s73, %s75
      %p79 = scmp.eq.s32.totalorder %s18, 0
      %p80 = por %p78, %p79
      %p81 = scmp.ne.s32.totalorder %s73, %s75
      %p82 = scmp.eq.s32.totalorder %s23, 3
      %p83 = por %p81, %p82
      %p84 = scmp.ne.s32.totalorder %s75, %s76
      %p85 = scmp.eq.s32.totalorder %s23, 0
      %p86 = por %p84, %p85
      %p87 = scmp.ne.s32.totalorder %s75, %s76
      %p88 = scmp.eq.s32.totalorder %s24, 3
      %p89 = por %p87, %p88
      %p91 = scmp.ne.s32.totalorder %s76, %s90
      %p92 = scmp.eq.s32.totalorder %s24, 0
      %p93 = por %p91, %p92
      %s95 = sadd.s32 %s94, 1
      %p98 = scmp.eq.s32.totalorder %s18, 3
      %p99 = scmp.ne.s32.totalorder %s94, %s96
      %p100 = scmp.eq.s32.totalorder %s18, 0
      %p101 = por %p99, %p100
      %p102 = scmp.ne.s32.totalorder %s94, %s96
      %p103 = scmp.eq.s32.totalorder %s23, 3
      %p104 = por %p102, %p103
      %p105 = scmp.ne.s32.totalorder %s96, %s97
      %p106 = scmp.eq.s32.totalorder %s23, 0
      %p107 = por %p105, %p106
      %p108 = scmp.ne.s32.totalorder %s96, %s97
      %p109 = scmp.eq.s32.totalorder %s24, 3
      %p110 = por %p108, %p109
      %p112 = scmp.ne.s32.totalorder %s97, %s111
      %p113 = scmp.eq.s32.totalorder %s24, 0
      %p114 = por %p112, %p113
      %s116 = sadd.s32 %s115, 1
      %p119 = scmp.eq.s32.totalorder %s18, 3
      %p120 = scmp.ne.s32.totalorder %s115, %s117
      %p121 = scmp.eq.s32.totalorder %s18, 0
      %p122 = por %p120, %p121
      %p123 = scmp.ne.s32.totalorder %s115, %s117
      %p124 = scmp.eq.s32.totalorder %s23, 3
      %p125 = por %p123, %p124
      %p126 = scmp.ne.s32.totalorder %s117, %s118
      %p127 = scmp.eq.s32.totalorder %s23, 0
      %p128 = por %p126, %p127
      %p129 = scmp.ne.s32.totalorder %s117, %s118
      %p130 = scmp.eq.s32.totalorder %s24, 3
      %p131 = por %p129, %p130
      %p133 = scmp.ne.s32.totalorder %s118, %s132
      %p134 = scmp.eq.s32.totalorder %s24, 0
      %p135 = por %p133, %p134
      %s136 = ssub.s32 %s18, %s25
      %p137 = scmp.eq.s32.totalorder %s136, 0
      %s139 = sadd.s32 %s138, 1
      %s140 = scalar_select %p137, %s138, %s139
      %p143 = pneg %p137
      %p144 = scmp.eq.s32.totalorder %s18, 3
      %p145 = por %p143, %p144
      %p146 = scmp.ne.s32.totalorder %s138, %s141
      %p147 = scmp.eq.s32.totalorder %s18, 0
      %p148 = por %p146, %p147
      %p149 = scmp.ne.s32.totalorder %s138, %s141
      %p150 = scmp.eq.s32.totalorder %s23, 3
      %p151 = por %p149, %p150
      %p152 = scmp.ne.s32.totalorder %s141, %s142
      %p153 = scmp.eq.s32.totalorder %s23, 0
      %p154 = por %p152, %p153
      %p155 = scmp.ne.s32.totalorder %s141, %s142
      %p156 = scmp.eq.s32.totalorder %s24, 3
      %p157 = por %p155, %p156
      %p159 = scmp.ne.s32.totalorder %s142, %s158
      %p160 = scmp.eq.s32.totalorder %s24, 0
      %p161 = por %p159, %p160
      %p162 = scmp.le.s32.totalorder 1, %s18
      %p163 = scmp.lt.s32.totalorder %s18, 5
      %p164 = pnand %p162, %p163
      %p165 = pneg %p164
      // Predicated region
      $region9: #{tpu_custom_call.1} parent=5 // pred_check
        _
      $region10: #{tpu_custom_call.1} parent=5 // pred_check_branch
        %167 = sbr.rel (%p164) target = $region12
      $region11: #{tpu_custom_call.1} parent=5 // pred_region
        %s168 = ssub.s32 %s18, 1
        // Predicated region
        $region13: #{tpu_custom_call.1} parent=11 // pred_check
          %p169 = pneg %p65
        $region14: #{tpu_custom_call.1} parent=11 // pred_check_branch
          %171 = sbr.rel (%p169) target = $region16
        $region15: #{tpu_custom_call.1} parent=11 // pred_region
          %s173 = ssub.s32 32768, 32768
          %174 = vsyncadd [#allocation6], %s173
          %s175 = sshll.u32 [#allocation5], 4
          %s176 = int_to_ptr.vmem [resolvable:$true] %s175
          %181 = dma.hbm_to_vmem [thread:$0]  %s1, 32768, %s176, [#allocation6], 256, 256, 16
        $region16: #{tpu_custom_call.1} parent=11 // pred_fallthru
          _
        // Predicated region
        $region17: #{tpu_custom_call.1} parent=11 // pred_check
          %p182 = pneg %p86
        $region18: #{tpu_custom_call.1} parent=11 // pred_check_branch
          %184 = sbr.rel (%p182) target = $region20
        $region19: #{tpu_custom_call.1} parent=11 // pred_region
          %s186 = ssub.s32 32, 32
          %187 = vsyncadd [#allocation6], %s186
          %s189 = sshll.u32 [#allocation7], 4
          %s190 = int_to_ptr.vmem [resolvable:$true] %s189
          %192 = dma.hbm_to_vmem [thread:$0]  %s2, 32, %s190, [#allocation6]
        $region20: #{tpu_custom_call.1} parent=11 // pred_fallthru
          _
        // Predicated region
        $region21: #{tpu_custom_call.1} parent=11 // pred_check
          %p193 = pneg %p107
        $region22: #{tpu_custom_call.1} parent=11 // pred_check_branch
          %195 = sbr.rel (%p193) target = $region24
        $region23: #{tpu_custom_call.1} parent=11 // pred_region
          %s197 = ssub.s32 32, 32
          %198 = vsyncadd [#allocation9], %s197
          %s200 = sshll.u32 [#allocation8], 4
          %s201 = int_to_ptr.vmem [resolvable:$true] %s200
          %203 = dma.hbm_to_vmem [thread:$0]  %s3, 32, %s201, [#allocation9]
        $region24: #{tpu_custom_call.1} parent=11 // pred_fallthru
          _
        // Predicated region
        $region25: #{tpu_custom_call.1} parent=11 // pred_check
          %p204 = pneg %p128
        $region26: #{tpu_custom_call.1} parent=11 // pred_check_branch
          %206 = sbr.rel (%p204) target = $region28
        $region27: #{tpu_custom_call.1} parent=11 // pred_region
          _
        $region28: #{tpu_custom_call.1} parent=11 // pred_fallthru
          _
      $region12: #{tpu_custom_call.1} parent=5 // pred_fallthru
        _
      %p207 = scmp.lt.s32.totalorder %s18, 4
      // Predicated region
      $region29: #{tpu_custom_call.1} parent=5 // pred_check
        %p208 = pneg %p207
      $region30: #{tpu_custom_call.1} parent=5 // pred_check_branch
        %210 = sbr.rel (%p208) target = $region32
      $region31: #{tpu_custom_call.1} parent=5 // pred_region
        // Predicated region
        $region33: #{tpu_custom_call.1} parent=31 // pred_check
          %p211 = pneg %p38
        $region34: #{tpu_custom_call.1} parent=31 // pred_check_branch
          %213 = sbr.rel (%p211) target = $region36
        $region35: #{tpu_custom_call.1} parent=31 // pred_region
          %s214 = sand.u32 %s28, 1
          %s215 = scalar_lea.sflag [#allocation4], %s214
          %s216 = sand.u32 %s28, 1
          %s217 = smul.addr %s216, 1024
          %s218 = scalar_lea.vmem [#allocation3], %s217
          %s219 = smul.u32 16, %s18
          %s221 = ssub.s32 16384, 16384
          %222 = vsyncadd %s215, %s221
          %s223 = smul.addr %s219, 8
          %s224 = smul.addr %s223, 128
          %s225 = scalar_lea.hbm %s0, %s224
          %s226 = sshll.u32 %s218, 4
          %s227 = int_to_ptr.vmem [resolvable:$true] %s226
          %232 = dma.hbm_to_vmem [thread:$0]  %s225, 16384, %s227, %s215, 1024, 1024, 64
        $region36: #{tpu_custom_call.1} parent=31 // pred_fallthru
          _
      $region32: #{tpu_custom_call.1} parent=5 // pred_fallthru
        _
      %p233 = scmp.le.s32.totalorder 1, %s18
      %p234 = scmp.lt.s32.totalorder %s18, 5
      %p235 = pnand %p233, %p234
      %p236 = pneg %p235
      // Predicated region
      $region37: #{tpu_custom_call.1} parent=5 // pred_check
        _
      $region38: #{tpu_custom_call.1} parent=5 // pred_check_branch
        %238 = sbr.rel (%p235) target = $region40
      $region39: #{tpu_custom_call.1} parent=5 // pred_region
        %s239 = ssub.s32 %s18, 1
        %s240 = sand.u32 %s31, 1
        %s241 = scalar_lea.sflag [#allocation4], %s240
        %s242 = sand.u32 %s31, 1
        %s243 = smul.addr %s242, 1024
        %s244 = scalar_lea.vmem [#allocation3], %s243
        // Predicated region
        $region41: #{tpu_custom_call.1} parent=39 // pred_check
          %p245 = pneg %p44
        $region42: #{tpu_custom_call.1} parent=39 // pred_check_branch
          %247 = sbr.rel (%p245) target = $region44
        $region43: #{tpu_custom_call.1} parent=39 // pred_region
          %248 = dma.done %s241, 16384
        $region44: #{tpu_custom_call.1} parent=39 // pred_fallthru
          _
        // Predicated region
        $region45: #{tpu_custom_call.1} parent=39 // pred_check
          %p249 = pneg %p65
        $region46: #{tpu_custom_call.1} parent=39 // pred_check_branch
          %251 = sbr.rel (%p249) target = $region48
        $region47: #{tpu_custom_call.1} parent=39 // pred_region
          %252 = dma.done [#allocation6], 32768
        $region48: #{tpu_custom_call.1} parent=39 // pred_fallthru
          _
        // Predicated region
        $region49: #{tpu_custom_call.1} parent=39 // pred_check
          %p253 = pneg %p86
        $region50: #{tpu_custom_call.1} parent=39 // pred_check_branch
          %255 = sbr.rel (%p253) target = $region52
        $region51: #{tpu_custom_call.1} parent=39 // pred_region
          %256 = dma.done [#allocation6], 32
        $region52: #{tpu_custom_call.1} parent=39 // pred_fallthru
          _
        // Predicated region
        $region53: #{tpu_custom_call.1} parent=39 // pred_check
          %p257 = pneg %p107
        $region54: #{tpu_custom_call.1} parent=39 // pred_check_branch
          %259 = sbr.rel (%p257) target = $region56
        $region55: #{tpu_custom_call.1} parent=39 // pred_region
          %260 = dma.done [#allocation9], 32
        $region56: #{tpu_custom_call.1} parent=39 // pred_fallthru
          _
        %s261 = sand.u32 %s31, 1
        %s262 = scalar_lea.sflag [#allocation4], %s261
        %s263 = sand.u32 %s31, 1
        %s264 = smul.addr %s263, 1024
        %s265 = scalar_lea.vmem [#allocation3], %s264
        %p266 = pneg %p44
        %p267 = pneg %p41
        %p268 = pneg %p65
        %p269 = pneg %p62
        %p270 = pneg %p86
        %p271 = pneg %p83
        %p272 = pneg %p107
        %p273 = pneg %p104
        %p274 = pneg %p128
        %p275 = pneg %p125
        %p276 = pneg %p154
        %p277 = pneg %p151
        %s278 = smul.u32 16, %s23
        %p279 = scmp.lt.s32.totalorder %s278, 63
        %s280 = scalar_select %p279, %s278, 63
        %s281 = smul.addr %s280, 8
        %s282 = scalar_lea.vmem %s5, %s281
        %s283 = smul.u32 16, %s23
        %s284 = smul.u32 16, %s23
        %p285 = scmp.lt.s32.totalorder %s284, 63
        %s286 = scalar_select %p285, %s284, 63
        %s287 = smul.addr %s286, 8
        %s288 = scalar_lea.vmem %s5, %s287
        %s289 = smul.u32 16, %s23
        %v290 = vld [vmem:[#allocation5] sm:$0xff]
        %v291 = vld [vmem:[#allocation5 + $0x8] sm:$0xff]
        %v292 = vld [vmem:[#allocation5 + $0x10] sm:$0xff]
        %v293 = vld [vmem:[#allocation5 + $0x18] sm:$0xff]
        %v294 = vld [vmem:[#allocation5 + $0x20] sm:$0xff]
        %v295 = vld [vmem:[#allocation5 + $0x28] sm:$0xff]
        %v296 = vld [vmem:[#allocation5 + $0x30] sm:$0xff]
        %v297 = vld [vmem:[#allocation5 + $0x38] sm:$0xff]
        %v298 = vld [vmem:[#allocation5 + $0x40] sm:$0xff]
        %v299 = vld [vmem:[#allocation5 + $0x48] sm:$0xff]
        %v300 = vld [vmem:[#allocation5 + $0x50] sm:$0xff]
        %v301 = vld [vmem:[#allocation5 + $0x58] sm:$0xff]
        %v302 = vld [vmem:[#allocation5 + $0x60] sm:$0xff]
        %v303 = vld [vmem:[#allocation5 + $0x68] sm:$0xff]
        %v304 = vld [vmem:[#allocation5 + $0x70] sm:$0xff]
        %v305 = vld [vmem:[#allocation5 + $0x78] sm:$0xff]
        %v306 = vld [vmem:[#allocation5 + $0x80] sm:$0xff]
        %v307 = vld [vmem:[#allocation5 + $0x88] sm:$0xff]
        %v308 = vld [vmem:[#allocation5 + $0x90] sm:$0xff]
        %v309 = vld [vmem:[#allocation5 + $0x98] sm:$0xff]
        %v310 = vld [vmem:[#allocation5 + $0xa0] sm:$0xff]
        %v311 = vld [vmem:[#allocation5 + $0xa8] sm:$0xff]
        %v312 = vld [vmem:[#allocation5 + $0xb0] sm:$0xff]
        %v313 = vld [vmem:[#allocation5 + $0xb8] sm:$0xff]
        %v314 = vld [vmem:[#allocation5 + $0xc0] sm:$0xff]
        %v315 = vld [vmem:[#allocation5 + $0xc8] sm:$0xff]
        %v316 = vld [vmem:[#allocation5 + $0xd0] sm:$0xff]
        %v317 = vld [vmem:[#allocation5 + $0xd8] sm:$0xff]
        %v318 = vld [vmem:[#allocation5 + $0xe0] sm:$0xff]
        %v319 = vld [vmem:[#allocation5 + $0xe8] sm:$0xff]
        %v320 = vld [vmem:[#allocation5 + $0xf0] sm:$0xff]
        %v321 = vld [vmem:[#allocation5 + $0xf8] sm:$0xff]
        %v322 = vld [vmem:[#allocation5 + $0x100] sm:$0xff]
        %v323 = vld [vmem:[#allocation5 + $0x108] sm:$0xff]
        %v324 = vld [vmem:[#allocation5 + $0x110] sm:$0xff]
        %v325 = vld [vmem:[#allocation5 + $0x118] sm:$0xff]
        %v326 = vld [vmem:[#allocation5 + $0x120] sm:$0xff]
        %v327 = vld [vmem:[#allocation5 + $0x128] sm:$0xff]
        %v328 = vld [vmem:[#allocation5 + $0x130] sm:$0xff]
        %v329 = vld [vmem:[#allocation5 + $0x138] sm:$0xff]
        %v330 = vld [vmem:[#allocation5 + $0x140] sm:$0xff]
        %v331 = vld [vmem:[#allocation5 + $0x148] sm:$0xff]
        %v332 = vld [vmem:[#allocation5 + $0x150] sm:$0xff]
        %v333 = vld [vmem:[#allocation5 + $0x158] sm:$0xff]
        %v334 = vld [vmem:[#allocation5 + $0x160] sm:$0xff]
        %v335 = vld [vmem:[#allocation5 + $0x168] sm:$0xff]
        %v336 = vld [vmem:[#allocation5 + $0x170] sm:$0xff]
        %v337 = vld [vmem:[#allocation5 + $0x178] sm:$0xff]
        %v338 = vld [vmem:[#allocation5 + $0x180] sm:$0xff]
        %v339 = vld [vmem:[#allocation5 + $0x188] sm:$0xff]
        %v340 = vld [vmem:[#allocation5 + $0x190] sm:$0xff]
        %v341 = vld [vmem:[#allocation5 + $0x198] sm:$0xff]
        %v342 = vld [vmem:[#allocation5 + $0x1a0] sm:$0xff]
        %v343 = vld [vmem:[#allocation5 + $0x1a8] sm:$0xff]
        %v344 = vld [vmem:[#allocation5 + $0x1b0] sm:$0xff]
        %v345 = vld [vmem:[#allocation5 + $0x1b8] sm:$0xff]
        %v346 = vld [vmem:[#allocation5 + $0x1c0] sm:$0xff]
        %v347 = vld [vmem:[#allocation5 + $0x1c8] sm:$0xff]
        %v348 = vld [vmem:[#allocation5 + $0x1d0] sm:$0xff]
        %v349 = vld [vmem:[#allocation5 + $0x1d8] sm:$0xff]
        %v350 = vld [vmem:[#allocation5 + $0x1e0] sm:$0xff]
        %v351 = vld [vmem:[#allocation5 + $0x1e8] sm:$0xff]
        %v352 = vld [vmem:[#allocation5 + $0x1f0] sm:$0xff]
        %v353 = vld [vmem:[#allocation5 + $0x1f8] sm:$0xff]
        %v354 = vld [vmem:[#allocation5 + $0x200] sm:$0xff]
        %v355 = vld [vmem:[#allocation5 + $0x208] sm:$0xff]
        %v356 = vld [vmem:[#allocation5 + $0x210] sm:$0xff]
        %v357 = vld [vmem:[#allocation5 + $0x218] sm:$0xff]
        %v358 = vld [vmem:[#allocation5 + $0x220] sm:$0xff]
        %v359 = vld [vmem:[#allocation5 + $0x228] sm:$0xff]
        %v360 = vld [vmem:[#allocation5 + $0x230] sm:$0xff]
        %v361 = vld [vmem:[#allocation5 + $0x238] sm:$0xff]
        %v362 = vld [vmem:[#allocation5 + $0x240] sm:$0xff]
        %v363 = vld [vmem:[#allocation5 + $0x248] sm:$0xff]
        %v364 = vld [vmem:[#allocation5 + $0x250] sm:$0xff]
        %v365 = vld [vmem:[#allocation5 + $0x258] sm:$0xff]
        %v366 = vld [vmem:[#allocation5 + $0x260] sm:$0xff]
        %v367 = vld [vmem:[#allocation5 + $0x268] sm:$0xff]
        %v368 = vld [vmem:[#allocation5 + $0x270] sm:$0xff]
        %v369 = vld [vmem:[#allocation5 + $0x278] sm:$0xff]
        %v370 = vld [vmem:[#allocation5 + $0x280] sm:$0xff]
        %v371 = vld [vmem:[#allocation5 + $0x288] sm:$0xff]
        %v372 = vld [vmem:[#allocation5 + $0x290] sm:$0xff]
        %v373 = vld [vmem:[#allocation5 + $0x298] sm:$0xff]
        %v374 = vld [vmem:[#allocation5 + $0x2a0] sm:$0xff]
        %v375 = vld [vmem:[#allocation5 + $0x2a8] sm:$0xff]
        %v376 = vld [vmem:[#allocation5 + $0x2b0] sm:$0xff]
        %v377 = vld [vmem:[#allocation5 + $0x2b8] sm:$0xff]
        %v378 = vld [vmem:[#allocation5 + $0x2c0] sm:$0xff]
        %v379 = vld [vmem:[#allocation5 + $0x2c8] sm:$0xff]
        %v380 = vld [vmem:[#allocation5 + $0x2d0] sm:$0xff]
        %v381 = vld [vmem:[#allocation5 + $0x2d8] sm:$0xff]
        %v382 = vld [vmem:[#allocation5 + $0x2e0] sm:$0xff]
        %v383 = vld [vmem:[#allocation5 + $0x2e8] sm:$0xff]
        %v384 = vld [vmem:[#allocation5 + $0x2f0] sm:$0xff]
        %v385 = vld [vmem:[#allocation5 + $0x2f8] sm:$0xff]
        %v386 = vld [vmem:[#allocation5 + $0x300] sm:$0xff]
        %v387 = vld [vmem:[#allocation5 + $0x308] sm:$0xff]
        %v388 = vld [vmem:[#allocation5 + $0x310] sm:$0xff]
        %v389 = vld [vmem:[#allocation5 + $0x318] sm:$0xff]
        %v390 = vld [vmem:[#allocation5 + $0x320] sm:$0xff]
        %v391 = vld [vmem:[#allocation5 + $0x328] sm:$0xff]
        %v392 = vld [vmem:[#allocation5 + $0x330] sm:$0xff]
        %v393 = vld [vmem:[#allocation5 + $0x338] sm:$0xff]
        %v394 = vld [vmem:[#allocation5 + $0x340] sm:$0xff]
        %v395 = vld [vmem:[#allocation5 + $0x348] sm:$0xff]
        %v396 = vld [vmem:[#allocation5 + $0x350] sm:$0xff]
        %v397 = vld [vmem:[#allocation5 + $0x358] sm:$0xff]
        %v398 = vld [vmem:[#allocation5 + $0x360] sm:$0xff]
        %v399 = vld [vmem:[#allocation5 + $0x368] sm:$0xff]
        %v400 = vld [vmem:[#allocation5 + $0x370] sm:$0xff]
        %v401 = vld [vmem:[#allocation5 + $0x378] sm:$0xff]
        %v402 = vld [vmem:[#allocation5 + $0x380] sm:$0xff]
        %v403 = vld [vmem:[#allocation5 + $0x388] sm:$0xff]
        %v404 = vld [vmem:[#allocation5 + $0x390] sm:$0xff]
        %v405 = vld [vmem:[#allocation5 + $0x398] sm:$0xff]
        %v406 = vld [vmem:[#allocation5 + $0x3a0] sm:$0xff]
        %v407 = vld [vmem:[#allocation5 + $0x3a8] sm:$0xff]
        %v408 = vld [vmem:[#allocation5 + $0x3b0] sm:$0xff]
        %v409 = vld [vmem:[#allocation5 + $0x3b8] sm:$0xff]
        %v410 = vld [vmem:[#allocation5 + $0x3c0] sm:$0xff]
        %v411 = vld [vmem:[#allocation5 + $0x3c8] sm:$0xff]
        %v412 = vld [vmem:[#allocation5 + $0x3d0] sm:$0xff]
        %v413 = vld [vmem:[#allocation5 + $0x3d8] sm:$0xff]
        %v414 = vld [vmem:[#allocation5 + $0x3e0] sm:$0xff]
        %v415 = vld [vmem:[#allocation5 + $0x3e8] sm:$0xff]
        %v416 = vld [vmem:[#allocation5 + $0x3f0] sm:$0xff]
        %v417 = vld [vmem:[#allocation5 + $0x3f8] sm:$0xff]
        %v418 = vld [vmem:[#allocation5 + $0x400] sm:$0xff]
        %v419 = vld [vmem:[#allocation5 + $0x408] sm:$0xff]
        %v420 = vld [vmem:[#allocation5 + $0x410] sm:$0xff]
        %v421 = vld [vmem:[#allocation5 + $0x418] sm:$0xff]
        %v422 = vld [vmem:[#allocation5 + $0x420] sm:$0xff]
        %v423 = vld [vmem:[#allocation5 + $0x428] sm:$0xff]
        %v424 = vld [vmem:[#allocation5 + $0x430] sm:$0xff]
        %v425 = vld [vmem:[#allocation5 + $0x438] sm:$0xff]
        %v426 = vld [vmem:[#allocation5 + $0x440] sm:$0xff]
        %v427 = vld [vmem:[#allocation5 + $0x448] sm:$0xff]
        %v428 = vld [vmem:[#allocation5 + $0x450] sm:$0xff]
        %v429 = vld [vmem:[#allocation5 + $0x458] sm:$0xff]
        %v430 = vld [vmem:[#allocation5 + $0x460] sm:$0xff]
        %v431 = vld [vmem:[#allocation5 + $0x468] sm:$0xff]
        %v432 = vld [vmem:[#allocation5 + $0x470] sm:$0xff]
        %v433 = vld [vmem:[#allocation5 + $0x478] sm:$0xff]
        %v434 = vld [vmem:[#allocation5 + $0x480] sm:$0xff]
        %v435 = vld [vmem:[#allocation5 + $0x488] sm:$0xff]
        %v436 = vld [vmem:[#allocation5 + $0x490] sm:$0xff]
        %v437 = vld [vmem:[#allocation5 + $0x498] sm:$0xff]
        %v438 = vld [vmem:[#allocation5 + $0x4a0] sm:$0xff]
        %v439 = vld [vmem:[#allocation5 + $0x4a8] sm:$0xff]
        %v440 = vld [vmem:[#allocation5 + $0x4b0] sm:$0xff]
        %v441 = vld [vmem:[#allocation5 + $0x4b8] sm:$0xff]
        %v442 = vld [vmem:[#allocation5 + $0x4c0] sm:$0xff]
        %v443 = vld [vmem:[#allocation5 + $0x4c8] sm:$0xff]
        %v444 = vld [vmem:[#allocation5 + $0x4d0] sm:$0xff]
        %v445 = vld [vmem:[#allocation5 + $0x4d8] sm:$0xff]
        %v446 = vld [vmem:[#allocation5 + $0x4e0] sm:$0xff]
        %v447 = vld [vmem:[#allocation5 + $0x4e8] sm:$0xff]
        %v448 = vld [vmem:[#allocation5 + $0x4f0] sm:$0xff]
        %v449 = vld [vmem:[#allocation5 + $0x4f8] sm:$0xff]
        %v450 = vld [vmem:[#allocation5 + $0x500] sm:$0xff]
        %v451 = vld [vmem:[#allocation5 + $0x508] sm:$0xff]
        %v452 = vld [vmem:[#allocation5 + $0x510] sm:$0xff]
        %v453 = vld [vmem:[#allocation5 + $0x518] sm:$0xff]
        %v454 = vld [vmem:[#allocation5 + $0x520] sm:$0xff]
        %v455 = vld [vmem:[#allocation5 + $0x528] sm:$0xff]
        %v456 = vld [vmem:[#allocation5 + $0x530] sm:$0xff]
        %v457 = vld [vmem:[#allocation5 + $0x538] sm:$0xff]
        %v458 = vld [vmem:[#allocation5 + $0x540] sm:$0xff]
        %v459 = vld [vmem:[#allocation5 + $0x548] sm:$0xff]
        %v460 = vld [vmem:[#allocation5 + $0x550] sm:$0xff]
        %v461 = vld [vmem:[#allocation5 + $0x558] sm:$0xff]
        %v462 = vld [vmem:[#allocation5 + $0x560] sm:$0xff]
        %v463 = vld [vmem:[#allocation5 + $0x568] sm:$0xff]
        %v464 = vld [vmem:[#allocation5 + $0x570] sm:$0xff]
        %v465 = vld [vmem:[#allocation5 + $0x578] sm:$0xff]
        %v466 = vld [vmem:[#allocation5 + $0x580] sm:$0xff]
        %v467 = vld [vmem:[#allocation5 + $0x588] sm:$0xff]
        %v468 = vld [vmem:[#allocation5 + $0x590] sm:$0xff]
        %v469 = vld [vmem:[#allocation5 + $0x598] sm:$0xff]
        %v470 = vld [vmem:[#allocation5 + $0x5a0] sm:$0xff]
        %v471 = vld [vmem:[#allocation5 + $0x5a8] sm:$0xff]
        %v472 = vld [vmem:[#allocation5 + $0x5b0] sm:$0xff]
        %v473 = vld [vmem:[#allocation5 + $0x5b8] sm:$0xff]
        %v474 = vld [vmem:[#allocation5 + $0x5c0] sm:$0xff]
        %v475 = vld [vmem:[#allocation5 + $0x5c8] sm:$0xff]
        %v476 = vld [vmem:[#allocation5 + $0x5d0] sm:$0xff]
        %v477 = vld [vmem:[#allocation5 + $0x5d8] sm:$0xff]
        %v478 = vld [vmem:[#allocation5 + $0x5e0] sm:$0xff]
        %v479 = vld [vmem:[#allocation5 + $0x5e8] sm:$0xff]
        %v480 = vld [vmem:[#allocation5 + $0x5f0] sm:$0xff]
        %v481 = vld [vmem:[#allocation5 + $0x5f8] sm:$0xff]
        %v482 = vld [vmem:[#allocation5 + $0x600] sm:$0xff]
        %v483 = vld [vmem:[#allocation5 + $0x608] sm:$0xff]
        %v484 = vld [vmem:[#allocation5 + $0x610] sm:$0xff]
        %v485 = vld [vmem:[#allocation5 + $0x618] sm:$0xff]
        %v486 = vld [vmem:[#allocation5 + $0x620] sm:$0xff]
        %v487 = vld [vmem:[#allocation5 + $0x628] sm:$0xff]
        %v488 = vld [vmem:[#allocation5 + $0x630] sm:$0xff]
        %v489 = vld [vmem:[#allocation5 + $0x638] sm:$0xff]
        %v490 = vld [vmem:[#allocation5 + $0x640] sm:$0xff]
        %v491 = vld [vmem:[#allocation5 + $0x648] sm:$0xff]
        %v492 = vld [vmem:[#allocation5 + $0x650] sm:$0xff]
        %v493 = vld [vmem:[#allocation5 + $0x658] sm:$0xff]
        %v494 = vld [vmem:[#allocation5 + $0x660] sm:$0xff]
        %v495 = vld [vmem:[#allocation5 + $0x668] sm:$0xff]
        %v496 = vld [vmem:[#allocation5 + $0x670] sm:$0xff]
        %v497 = vld [vmem:[#allocation5 + $0x678] sm:$0xff]
        %v498 = vld [vmem:[#allocation5 + $0x680] sm:$0xff]
        %v499 = vld [vmem:[#allocation5 + $0x688] sm:$0xff]
        %v500 = vld [vmem:[#allocation5 + $0x690] sm:$0xff]
        %v501 = vld [vmem:[#allocation5 + $0x698] sm:$0xff]
        %v502 = vld [vmem:[#allocation5 + $0x6a0] sm:$0xff]
        %v503 = vld [vmem:[#allocation5 + $0x6a8] sm:$0xff]
        %v504 = vld [vmem:[#allocation5 + $0x6b0] sm:$0xff]
        %v505 = vld [vmem:[#allocation5 + $0x6b8] sm:$0xff]
        %v506 = vld [vmem:[#allocation5 + $0x6c0] sm:$0xff]
        %v507 = vld [vmem:[#allocation5 + $0x6c8] sm:$0xff]
        %v508 = vld [vmem:[#allocation5 + $0x6d0] sm:$0xff]
        %v509 = vld [vmem:[#allocation5 + $0x6d8] sm:$0xff]
        %v510 = vld [vmem:[#allocation5 + $0x6e0] sm:$0xff]
        %v511 = vld [vmem:[#allocation5 + $0x6e8] sm:$0xff]
        %v512 = vld [vmem:[#allocation5 + $0x6f0] sm:$0xff]
        %v513 = vld [vmem:[#allocation5 + $0x6f8] sm:$0xff]
        %v514 = vld [vmem:[#allocation5 + $0x700] sm:$0xff]
        %v515 = vld [vmem:[#allocation5 + $0x708] sm:$0xff]
        %v516 = vld [vmem:[#allocation5 + $0x710] sm:$0xff]
        %v517 = vld [vmem:[#allocation5 + $0x718] sm:$0xff]
        %v518 = vld [vmem:[#allocation5 + $0x720] sm:$0xff]
        %v519 = vld [vmem:[#allocation5 + $0x728] sm:$0xff]
        %v520 = vld [vmem:[#allocation5 + $0x730] sm:$0xff]
        %v521 = vld [vmem:[#allocation5 + $0x738] sm:$0xff]
        %v522 = vld [vmem:[#allocation5 + $0x740] sm:$0xff]
        %v523 = vld [vmem:[#allocation5 + $0x748] sm:$0xff]
        %v524 = vld [vmem:[#allocation5 + $0x750] sm:$0xff]
        %v525 = vld [vmem:[#allocation5 + $0x758] sm:$0xff]
        %v526 = vld [vmem:[#allocation5 + $0x760] sm:$0xff]
        %v527 = vld [vmem:[#allocation5 + $0x768] sm:$0xff]
        %v528 = vld [vmem:[#allocation5 + $0x770] sm:$0xff]
        %v529 = vld [vmem:[#allocation5 + $0x778] sm:$0xff]
        %v530 = vld [vmem:[#allocation5 + $0x780] sm:$0xff]
        %v531 = vld [vmem:[#allocation5 + $0x788] sm:$0xff]
        %v532 = vld [vmem:[#allocation5 + $0x790] sm:$0xff]
        %v533 = vld [vmem:[#allocation5 + $0x798] sm:$0xff]
        %v534 = vld [vmem:[#allocation5 + $0x7a0] sm:$0xff]
        %v535 = vld [vmem:[#allocation5 + $0x7a8] sm:$0xff]
        %v536 = vld [vmem:[#allocation5 + $0x7b0] sm:$0xff]
        %v537 = vld [vmem:[#allocation5 + $0x7b8] sm:$0xff]
        %v538 = vld [vmem:[#allocation5 + $0x7c0] sm:$0xff]
        %v539 = vld [vmem:[#allocation5 + $0x7c8] sm:$0xff]
        %v540 = vld [vmem:[#allocation5 + $0x7d0] sm:$0xff]
        %v541 = vld [vmem:[#allocation5 + $0x7d8] sm:$0xff]
        %v542 = vld [vmem:[#allocation5 + $0x7e0] sm:$0xff]
        %v543 = vld [vmem:[#allocation5 + $0x7e8] sm:$0xff]
        %v544 = vld [vmem:[#allocation5 + $0x7f0] sm:$0xff]
        %v545 = vld [vmem:[#allocation5 + $0x7f8] sm:$0xff]
        %v546 = vld [vmem:[%s244] sm:$0xff]
        %v547 = vld [vmem:[%s244 + $0x8] sm:$0xff]
        %v548 = vld [vmem:[%s244 + $0x10] sm:$0xff]
        %v549 = vld [vmem:[%s244 + $0x18] sm:$0xff]
        %v550 = vld [vmem:[%s244 + $0x20] sm:$0xff]
        %v551 = vld [vmem:[%s244 + $0x28] sm:$0xff]
        %v552 = vld [vmem:[%s244 + $0x30] sm:$0xff]
        %v553 = vld [vmem:[%s244 + $0x38] sm:$0xff]
        %v554 = vld [vmem:[%s244 + $0x40] sm:$0xff]
        %v555 = vld [vmem:[%s244 + $0x48] sm:$0xff]
        %v556 = vld [vmem:[%s244 + $0x50] sm:$0xff]
        %v557 = vld [vmem:[%s244 + $0x58] sm:$0xff]
        %v558 = vld [vmem:[%s244 + $0x60] sm:$0xff]
        %v559 = vld [vmem:[%s244 + $0x68] sm:$0xff]
        %v560 = vld [vmem:[%s244 + $0x70] sm:$0xff]
        %v561 = vld [vmem:[%s244 + $0x78] sm:$0xff]
        %v562 = vld [vmem:[%s244 + $0x80] sm:$0xff]
        %v563 = vld [vmem:[%s244 + $0x88] sm:$0xff]
        %v564 = vld [vmem:[%s244 + $0x90] sm:$0xff]
        %v565 = vld [vmem:[%s244 + $0x98] sm:$0xff]
        %v566 = vld [vmem:[%s244 + $0xa0] sm:$0xff]
        %v567 = vld [vmem:[%s244 + $0xa8] sm:$0xff]
        %v568 = vld [vmem:[%s244 + $0xb0] sm:$0xff]
        %v569 = vld [vmem:[%s244 + $0xb8] sm:$0xff]
        %v570 = vld [vmem:[%s244 + $0xc0] sm:$0xff]
        %v571 = vld [vmem:[%s244 + $0xc8] sm:$0xff]
        %v572 = vld [vmem:[%s244 + $0xd0] sm:$0xff]
        %v573 = vld [vmem:[%s244 + $0xd8] sm:$0xff]
        %v574 = vld [vmem:[%s244 + $0xe0] sm:$0xff]
        %v575 = vld [vmem:[%s244 + $0xe8] sm:$0xff]
        %v576 = vld [vmem:[%s244 + $0xf0] sm:$0xff]
        %v577 = vld [vmem:[%s244 + $0xf8] sm:$0xff]
        %v578 = vld [vmem:[%s244 + $0x100] sm:$0xff]
        %v579 = vld [vmem:[%s244 + $0x108] sm:$0xff]
        %v580 = vld [vmem:[%s244 + $0x110] sm:$0xff]
        %v581 = vld [vmem:[%s244 + $0x118] sm:$0xff]
        %v582 = vld [vmem:[%s244 + $0x120] sm:$0xff]
        %v583 = vld [vmem:[%s244 + $0x128] sm:$0xff]
        %v584 = vld [vmem:[%s244 + $0x130] sm:$0xff]
        %v585 = vld [vmem:[%s244 + $0x138] sm:$0xff]
        %v586 = vld [vmem:[%s244 + $0x140] sm:$0xff]
        %v587 = vld [vmem:[%s244 + $0x148] sm:$0xff]
        %v588 = vld [vmem:[%s244 + $0x150] sm:$0xff]
        %v589 = vld [vmem:[%s244 + $0x158] sm:$0xff]
        %v590 = vld [vmem:[%s244 + $0x160] sm:$0xff]
        %v591 = vld [vmem:[%s244 + $0x168] sm:$0xff]
        %v592 = vld [vmem:[%s244 + $0x170] sm:$0xff]
        %v593 = vld [vmem:[%s244 + $0x178] sm:$0xff]
        %v594 = vld [vmem:[%s244 + $0x180] sm:$0xff]
        %v595 = vld [vmem:[%s244 + $0x188] sm:$0xff]
        %v596 = vld [vmem:[%s244 + $0x190] sm:$0xff]
        %v597 = vld [vmem:[%s244 + $0x198] sm:$0xff]
        %v598 = vld [vmem:[%s244 + $0x1a0] sm:$0xff]
        %v599 = vld [vmem:[%s244 + $0x1a8] sm:$0xff]
        %v600 = vld [vmem:[%s244 + $0x1b0] sm:$0xff]
        %v601 = vld [vmem:[%s244 + $0x1b8] sm:$0xff]
        %v602 = vld [vmem:[%s244 + $0x1c0] sm:$0xff]
        %v603 = vld [vmem:[%s244 + $0x1c8] sm:$0xff]
        %v604 = vld [vmem:[%s244 + $0x1d0] sm:$0xff]
        %v605 = vld [vmem:[%s244 + $0x1d8] sm:$0xff]
        %v606 = vld [vmem:[%s244 + $0x1e0] sm:$0xff]
        %v607 = vld [vmem:[%s244 + $0x1e8] sm:$0xff]
        %v608 = vld [vmem:[%s244 + $0x1f0] sm:$0xff]
        %v609 = vld [vmem:[%s244 + $0x1f8] sm:$0xff]
        %v610 = vld [vmem:[%s244 + $0x200] sm:$0xff]
        %v611 = vld [vmem:[%s244 + $0x208] sm:$0xff]
        %v612 = vld [vmem:[%s244 + $0x210] sm:$0xff]
        %v613 = vld [vmem:[%s244 + $0x218] sm:$0xff]
        %v614 = vld [vmem:[%s244 + $0x220] sm:$0xff]
        %v615 = vld [vmem:[%s244 + $0x228] sm:$0xff]
        %v616 = vld [vmem:[%s244 + $0x230] sm:$0xff]
        %v617 = vld [vmem:[%s244 + $0x238] sm:$0xff]
        %v618 = vld [vmem:[%s244 + $0x240] sm:$0xff]
        %v619 = vld [vmem:[%s244 + $0x248] sm:$0xff]
        %v620 = vld [vmem:[%s244 + $0x250] sm:$0xff]
        %v621 = vld [vmem:[%s244 + $0x258] sm:$0xff]
        %v622 = vld [vmem:[%s244 + $0x260] sm:$0xff]
        %v623 = vld [vmem:[%s244 + $0x268] sm:$0xff]
        %v624 = vld [vmem:[%s244 + $0x270] sm:$0xff]
        %v625 = vld [vmem:[%s244 + $0x278] sm:$0xff]
        %v626 = vld [vmem:[%s244 + $0x280] sm:$0xff]
        %v627 = vld [vmem:[%s244 + $0x288] sm:$0xff]
        %v628 = vld [vmem:[%s244 + $0x290] sm:$0xff]
        %v629 = vld [vmem:[%s244 + $0x298] sm:$0xff]
        %v630 = vld [vmem:[%s244 + $0x2a0] sm:$0xff]
        %v631 = vld [vmem:[%s244 + $0x2a8] sm:$0xff]
        %v632 = vld [vmem:[%s244 + $0x2b0] sm:$0xff]
        %v633 = vld [vmem:[%s244 + $0x2b8] sm:$0xff]
        %v634 = vld [vmem:[%s244 + $0x2c0] sm:$0xff]
        %v635 = vld [vmem:[%s244 + $0x2c8] sm:$0xff]
        %v636 = vld [vmem:[%s244 + $0x2d0] sm:$0xff]
        %v637 = vld [vmem:[%s244 + $0x2d8] sm:$0xff]
        %v638 = vld [vmem:[%s244 + $0x2e0] sm:$0xff]
        %v639 = vld [vmem:[%s244 + $0x2e8] sm:$0xff]
        %v640 = vld [vmem:[%s244 + $0x2f0] sm:$0xff]
        %v641 = vld [vmem:[%s244 + $0x2f8] sm:$0xff]
        %v642 = vld [vmem:[%s244 + $0x300] sm:$0xff]
        %v643 = vld [vmem:[%s244 + $0x308] sm:$0xff]
        %v644 = vld [vmem:[%s244 + $0x310] sm:$0xff]
        %v645 = vld [vmem:[%s244 + $0x318] sm:$0xff]
        %v646 = vld [vmem:[%s244 + $0x320] sm:$0xff]
        %v647 = vld [vmem:[%s244 + $0x328] sm:$0xff]
        %v648 = vld [vmem:[%s244 + $0x330] sm:$0xff]
        %v649 = vld [vmem:[%s244 + $0x338] sm:$0xff]
        %v650 = vld [vmem:[%s244 + $0x340] sm:$0xff]
        %v651 = vld [vmem:[%s244 + $0x348] sm:$0xff]
        %v652 = vld [vmem:[%s244 + $0x350] sm:$0xff]
        %v653 = vld [vmem:[%s244 + $0x358] sm:$0xff]
        %v654 = vld [vmem:[%s244 + $0x360] sm:$0xff]
        %v655 = vld [vmem:[%s244 + $0x368] sm:$0xff]
        %v656 = vld [vmem:[%s244 + $0x370] sm:$0xff]
        %v657 = vld [vmem:[%s244 + $0x378] sm:$0xff]
        %v658 = vld [vmem:[%s244 + $0x380] sm:$0xff]
        %v659 = vld [vmem:[%s244 + $0x388] sm:$0xff]
        %v660 = vld [vmem:[%s244 + $0x390] sm:$0xff]
        %v661 = vld [vmem:[%s244 + $0x398] sm:$0xff]
        %v662 = vld [vmem:[%s244 + $0x3a0] sm:$0xff]
        %v663 = vld [vmem:[%s244 + $0x3a8] sm:$0xff]
        %v664 = vld [vmem:[%s244 + $0x3b0] sm:$0xff]
        %v665 = vld [vmem:[%s244 + $0x3b8] sm:$0xff]
        %v666 = vld [vmem:[%s244 + $0x3c0] sm:$0xff]
        %v667 = vld [vmem:[%s244 + $0x3c8] sm:$0xff]
        %v668 = vld [vmem:[%s244 + $0x3d0] sm:$0xff]
        %v669 = vld [vmem:[%s244 + $0x3d8] sm:$0xff]
        %v670 = vld [vmem:[%s244 + $0x3e0] sm:$0xff]
        %v671 = vld [vmem:[%s244 + $0x3e8] sm:$0xff]
        %v672 = vld [vmem:[%s244 + $0x3f0] sm:$0xff]
        %v673 = vld [vmem:[%s244 + $0x3f8] sm:$0xff]
        %v674 = vld [vmem:[#allocation7] sm:$0x3]
        %v676 = vlaneseq
        %v677 = vshrl.u32 %v676, 7
        %v678 = vsub.s32 0, %v677
        %v679 = vrot.slane %v674, %v678
        %v680 = vlaneseq
        %v681 = vshrl.u32 %v680, 7
        %v682 = vsub.s32 1, %v681
        %v683 = vrot.slane %v674, %v682
        %686 = vmatprep.subr.mxu0 %v291
        %687 = vmatpush1.msra.mxu0 %v290
        %688 = vmatprep.subr.mxu0 %v293
        %689 = vmatpush1.msra.mxu0 %v292
        %690 = vmatprep.subr.mxu0 %v295
        %691 = vmatpush1.msra.mxu0 %v294
        %692 = vmatprep.subr.mxu0 %v297
        %693 = vmatpush1.msra.mxu0 %v296
        %694 = vmatprep.subr.mxu0 %v299
        %695 = vmatpush1.msra.mxu0 %v298
        %696 = vmatprep.subr.mxu0 %v301
        %697 = vmatpush1.msra.mxu0 %v300
        %698 = vmatprep.subr.mxu0 %v303
        %699 = vmatpush1.msra.mxu0 %v302
        %700 = vmatprep.subr.mxu0 %v305
        %701 = vmatpush1.msra.mxu0 %v304
        %702 = vmatprep.subr.mxu0 %v307
        %703 = vmatpush1.msra.mxu0 %v306
        %704 = vmatprep.subr.mxu0 %v309
        %705 = vmatpush1.msra.mxu0 %v308
        %706 = vmatprep.subr.mxu0 %v311
        %707 = vmatpush1.msra.mxu0 %v310
        %708 = vmatprep.subr.mxu0 %v313
        %709 = vmatpush1.msra.mxu0 %v312
        %710 = vmatprep.subr.mxu0 %v315
        %711 = vmatpush1.msra.mxu0 %v314
        %712 = vmatprep.subr.mxu0 %v317
        %713 = vmatpush1.msra.mxu0 %v316
        %714 = vmatprep.subr.mxu0 %v319
        %715 = vmatpush1.msra.mxu0 %v318
        %716 = vmatprep.subr.mxu0 %v321
        %717 = vmatpush1.msra.mxu0 %v320
        %718 = vmatprep.subr.mxu0 %v323
        %719 = vmatpush1.msra.mxu0 %v322
        %720 = vmatprep.subr.mxu0 %v325
        %721 = vmatpush1.msra.mxu0 %v324
        %722 = vmatprep.subr.mxu0 %v327
        %723 = vmatpush1.msra.mxu0 %v326
        %724 = vmatprep.subr.mxu0 %v329
        %725 = vmatpush1.msra.mxu0 %v328
        %726 = vmatprep.subr.mxu0 %v331
        %727 = vmatpush1.msra.mxu0 %v330
        %728 = vmatprep.subr.mxu0 %v333
        %729 = vmatpush1.msra.mxu0 %v332
        %730 = vmatprep.subr.mxu0 %v335
        %731 = vmatpush1.msra.mxu0 %v334
        %732 = vmatprep.subr.mxu0 %v337
        %733 = vmatpush1.msra.mxu0 %v336
        %734 = vmatprep.subr.mxu0 %v339
        %735 = vmatpush1.msra.mxu0 %v338
        %736 = vmatprep.subr.mxu0 %v341
        %737 = vmatpush1.msra.mxu0 %v340
        %738 = vmatprep.subr.mxu0 %v343
        %739 = vmatpush1.msra.mxu0 %v342
        %740 = vmatprep.subr.mxu0 %v345
        %741 = vmatpush1.msra.mxu0 %v344
        %742 = vmatprep.subr.mxu0 %v347
        %743 = vmatpush1.msra.mxu0 %v346
        %744 = vmatprep.subr.mxu0 %v349
        %745 = vmatpush1.msra.mxu0 %v348
        %746 = vmatprep.subr.mxu0 %v351
        %747 = vmatpush1.msra.mxu0 %v350
        %748 = vmatprep.subr.mxu0 %v353
        %749 = vmatpush1.msra.mxu0 %v352
        %750 = vmatprep.mubr.f32.mxu0 %v547
        %751 = vmatmul.mubr.f32.gmra.mrb[0].mxu0 %v546
        %v752 = vpop.f32.mrb[0].mxu0
        %v753 = vadd.f32 %v679, %v752
        %v754 = vpop.f32.mrb[0].mxu0
        %v755 = vadd.f32 %v683, %v754
        %756 = vmatprep.mubr.f32.mxu0 %v555
        %757 = vmatmul.mubr.f32.gmra.mrb[0].mxu0 %v554
        %v758 = vpop.f32.mrb[0].mxu0
        %v759 = vadd.f32 %v679, %v758
        %v760 = vpop.f32.mrb[0].mxu0
        %v761 = vadd.f32 %v683, %v760
        %762 = vmatprep.mubr.f32.mxu0 %v563
        %763 = vmatmul.mubr.f32.gmra.mrb[0].mxu0 %v562
        %v764 = vpop.f32.mrb[0].mxu0
        %v765 = vadd.f32 %v679, %v764
        %v766 = vpop.f32.mrb[0].mxu0
        %v767 = vadd.f32 %v683, %v766
        %768 = vmatprep.mubr.f32.mxu0 %v571
        %769 = vmatmul.mubr.f32.gmra.mrb[0].mxu0 %v570
        %v770 = vpop.f32.mrb[0].mxu0
        %v771 = vadd.f32 %v679, %v770
        %v772 = vpop.f32.mrb[0].mxu0
        %v773 = vadd.f32 %v683, %v772
        %774 = vmatprep.mubr.f32.mxu0 %v579
        %775 = vmatmul.mubr.f32.gmra.mrb[0].mxu0 %v578
        %v776 = vpop.f32.mrb[0].mxu0
        %v777 = vadd.f32 %v679, %v776
        %v778 = vpop.f32.mrb[0].mxu0
        %v779 = vadd.f32 %v683, %v778
        %780 = vmatprep.mubr.f32.mxu0 %v587
        %781 = vmatmul.mubr.f32.gmra.mrb[0].mxu0 %v586
        %v782 = vpop.f32.mrb[0].mxu0
        %v783 = vadd.f32 %v679, %v782
        %v784 = vpop.f32.mrb[0].mxu0
        %v785 = vadd.f32 %v683, %v784
        %786 = vmatprep.mubr.f32.mxu0 %v595
        %787 = vmatmul.mubr.f32.gmra.mrb[0].mxu0 %v594
        %v788 = vpop.f32.mrb[0].mxu0
        %v789 = vadd.f32 %v679, %v788
        %v790 = vpop.f32.mrb[0].mxu0
        %v791 = vadd.f32 %v683, %v790
        %792 = vmatprep.mubr.f32.mxu0 %v603
        %793 = vmatmul.mubr.f32.gmra.mrb[0].mxu0 %v602
        %v794 = vpop.f32.mrb[0].mxu0
        %v795 = vadd.f32 %v679, %v794
        %v796 = vpop.f32.mrb[0].mxu0
        %v797 = vadd.f32 %v683, %v796
        %798 = vmatprep.mubr.f32.mxu0 %v611
        %799 = vmatmul.mubr.f32.gmra.mrb[0].mxu0 %v610
        %v800 = vpop.f32.mrb[0].mxu0
        %v801 = vadd.f32 %v679, %v800
        %v802 = vpop.f32.mrb[0].mxu0
        %v803 = vadd.f32 %v683, %v802
        %804 = vmatprep.mubr.f32.mxu0 %v619
        %805 = vmatmul.mubr.f32.gmra.mrb[0].mxu0 %v618
        %v806 = vpop.f32.mrb[0].mxu0
        %v807 = vadd.f32 %v679, %v806
        %v808 = vpop.f32.mrb[0].mxu0
        %v809 = vadd.f32 %v683, %v808
        %810 = vmatprep.mubr.f32.mxu0 %v627
        %811 = vmatmul.mubr.f32.gmra.mrb[0].mxu0 %v626
        %v812 = vpop.f32.mrb[0].mxu0
        %v813 = vadd.f32 %v679, %v812
        %v814 = vpop.f32.mrb[0].mxu0
        %v815 = vadd.f32 %v683, %v814
        %816 = vmatprep.mubr.f32.mxu0 %v635
        %817 = vmatmul.mubr.f32.gmra.mrb[0].mxu0 %v634
        %v818 = vpop.f32.mrb[0].mxu0
        %v819 = vadd.f32 %v679, %v818
        %v820 = vpop.f32.mrb[0].mxu0
        %v821 = vadd.f32 %v683, %v820
        %822 = vmatprep.mubr.f32.mxu0 %v643
        %823 = vmatmul.mubr.f32.gmra.mrb[0].mxu0 %v642
        %v824 = vpop.f32.mrb[0].mxu0
        %v825 = vadd.f32 %v679, %v824
        %v826 = vpop.f32.mrb[0].mxu0
        %v827 = vadd.f32 %v683, %v826
        %828 = vmatprep.mubr.f32.mxu0 %v651
        %829 = vmatmul.mubr.f32.gmra.mrb[0].mxu0 %v650
        %v830 = vpop.f32.mrb[0].mxu0
        %v831 = vadd.f32 %v679, %v830
        %v832 = vpop.f32.mrb[0].mxu0
        %v833 = vadd.f32 %v683, %v832
        %834 = vmatprep.mubr.f32.mxu0 %v659
        %835 = vmatmul.mubr.f32.gmra.mrb[0].mxu0 %v658
        %v836 = vpop.f32.mrb[0].mxu0
        %v837 = vadd.f32 %v679, %v836
        %v838 = vpop.f32.mrb[0].mxu0
        %v839 = vadd.f32 %v683, %v838
        %840 = vmatprep.mubr.f32.mxu0 %v667
        %841 = vmatmul.mubr.f32.gmra.mrb[0].mxu0 %v666
        %v842 = vpop.f32.mrb[0].mxu0
        %v843 = vadd.f32 %v679, %v842
        %v844 = vpop.f32.mrb[0].mxu0
        %v845 = vadd.f32 %v683, %v844
        %846 = vdwg.mxu0
        %847 = vmatprep.subr.mxu0 %v355
        %848 = vmatpush1.msra.mxu0 %v354
        %849 = vmatprep.subr.mxu0 %v357
        %850 = vmatpush1.msra.mxu0 %v356
        %851 = vmatprep.subr.mxu0 %v359
        %852 = vmatpush1.msra.mxu0 %v358
        %853 = vmatprep.subr.mxu0 %v361
        %854 = vmatpush1.msra.mxu0 %v360
        %855 = vmatprep.subr.mxu0 %v363
        %856 = vmatpush1.msra.mxu0 %v362
        %857 = vmatprep.subr.mxu0 %v365
        %858 = vmatpush1.msra.mxu0 %v364
        %859 = vmatprep.subr.mxu0 %v367
        %860 = vmatpush1.msra.mxu0 %v366
        %861 = vmatprep.subr.mxu0 %v369
        %862 = vmatpush1.msra.mxu0 %v368
        %863 = vmatprep.subr.mxu0 %v371
        %864 = vmatpush1.msra.mxu0 %v370
        %865 = vmatprep.subr.mxu0 %v373
        %866 = vmatpush1.msra.mxu0 %v372
        %867 = vmatprep.subr.mxu0 %v375
        %868 = vmatpush1.msra.mxu0 %v374
        %869 = vmatprep.subr.mxu0 %v377
        %870 = vmatpush1.msra.mxu0 %v376
        %871 = vmatprep.subr.mxu0 %v379
        %872 = vmatpush1.msra.mxu0 %v378
        %873 = vmatprep.subr.mxu0 %v381
        %874 = vmatpush1.msra.mxu0 %v380
        %875 = vmatprep.subr.mxu0 %v383
        %876 = vmatpush1.msra.mxu0 %v382
        %877 = vmatprep.subr.mxu0 %v385
        %878 = vmatpush1.msra.mxu0 %v384
        %879 = vmatprep.subr.mxu0 %v387
        %880 = vmatpush1.msra.mxu0 %v386
        %881 = vmatprep.subr.mxu0 %v389
        %882 = vmatpush1.msra.mxu0 %v388
        %883 = vmatprep.subr.mxu0 %v391
        %884 = vmatpush1.msra.mxu0 %v390
        %885 = vmatprep.subr.mxu0 %v393
        %886 = vmatpush1.msra.mxu0 %v392
        %887 = vmatprep.subr.mxu0 %v395
        %888 = vmatpush1.msra.mxu0 %v394
        %889 = vmatprep.subr.mxu0 %v397
        %890 = vmatpush1.msra.mxu0 %v396
        %891 = vmatprep.subr.mxu0 %v399
        %892 = vmatpush1.msra.mxu0 %v398
        %893 = vmatprep.subr.mxu0 %v401
        %894 = vmatpush1.msra.mxu0 %v400
        %895 = vmatprep.subr.mxu0 %v403
        %896 = vmatpush1.msra.mxu0 %v402
        %897 = vmatprep.subr.mxu0 %v405
        %898 = vmatpush1.msra.mxu0 %v404
        %899 = vmatprep.subr.mxu0 %v407
        %900 = vmatpush1.msra.mxu0 %v406
        %901 = vmatprep.subr.mxu0 %v409
        %902 = vmatpush1.msra.mxu0 %v408
        %903 = vmatprep.subr.mxu0 %v411
        %904 = vmatpush1.msra.mxu0 %v410
        %905 = vmatprep.subr.mxu0 %v413
        %906 = vmatpush1.msra.mxu0 %v412
        %907 = vmatprep.subr.mxu0 %v415
        %908 = vmatpush1.msra.mxu0 %v414
        %909 = vmatprep.subr.mxu0 %v417
        %910 = vmatpush1.msra.mxu0 %v416
        %911 = vmatprep.mubr.f32.mxu0 %v549
        %912 = vmatmul.mubr.f32.gmra.mrb[0].mxu0 %v548
        %v913 = vpop.f32.mrb[0].mxu0
        %v914 = vadd.f32 %v753, %v913
        %v915 = vpop.f32.mrb[0].mxu0
        %v916 = vadd.f32 %v755, %v915
        %917 = vmatprep.mubr.f32.mxu0 %v557
        %918 = vmatmul.mubr.f32.gmra.mrb[0].mxu0 %v556
        %v919 = vpop.f32.mrb[0].mxu0
        %v920 = vadd.f32 %v759, %v919
        %v921 = vpop.f32.mrb[0].mxu0
        %v922 = vadd.f32 %v761, %v921
        %923 = vmatprep.mubr.f32.mxu0 %v565
        %924 = vmatmul.mubr.f32.gmra.mrb[0].mxu0 %v564
        %v925 = vpop.f32.mrb[0].mxu0
        %v926 = vadd.f32 %v765, %v925
        %v927 = vpop.f32.mrb[0].mxu0
        %v928 = vadd.f32 %v767, %v927
        %929 = vmatprep.mubr.f32.mxu0 %v573
        %930 = vmatmul.mubr.f32.gmra.mrb[0].mxu0 %v572
        %v931 = vpop.f32.mrb[0].mxu0
        %v932 = vadd.f32 %v771, %v931
        %v933 = vpop.f32.mrb[0].mxu0
        %v934 = vadd.f32 %v773, %v933
        %935 = vmatprep.mubr.f32.mxu0 %v581
        %936 = vmatmul.mubr.f32.gmra.mrb[0].mxu0 %v580
        %v937 = vpop.f32.mrb[0].mxu0
        %v938 = vadd.f32 %v777, %v937
        %v939 = vpop.f32.mrb[0].mxu0
        %v940 = vadd.f32 %v779, %v939
        %941 = vmatprep.mubr.f32.mxu0 %v589
        %942 = vmatmul.mubr.f32.gmra.mrb[0].mxu0 %v588
        %v943 = vpop.f32.mrb[0].mxu0
        %v944 = vadd.f32 %v783, %v943
        %v945 = vpop.f32.mrb[0].mxu0
        %v946 = vadd.f32 %v785, %v945
        %947 = vmatprep.mubr.f32.mxu0 %v597
        %948 = vmatmul.mubr.f32.gmra.mrb[0].mxu0 %v596
        %v949 = vpop.f32.mrb[0].mxu0
        %v950 = vadd.f32 %v789, %v949
        %v951 = vpop.f32.mrb[0].mxu0
        %v952 = vadd.f32 %v791, %v951
        %953 = vmatprep.mubr.f32.mxu0 %v605
        %954 = vmatmul.mubr.f32.gmra.mrb[0].mxu0 %v604
        %v955 = vpop.f32.mrb[0].mxu0
        %v956 = vadd.f32 %v795, %v955
        %v957 = vpop.f32.mrb[0].mxu0
        %v958 = vadd.f32 %v797, %v957
        %959 = vmatprep.mubr.f32.mxu0 %v613
        %960 = vmatmul.mubr.f32.gmra.mrb[0].mxu0 %v612
        %v961 = vpop.f32.mrb[0].mxu0
        %v962 = vadd.f32 %v801, %v961
        %v963 = vpop.f32.mrb[0].mxu0
        %v964 = vadd.f32 %v803, %v963
        %965 = vmatprep.mubr.f32.mxu0 %v621
        %966 = vmatmul.mubr.f32.gmra.mrb[0].mxu0 %v620
        %v967 = vpop.f32.mrb[0].mxu0
        %v968 = vadd.f32 %v807, %v967
        %v969 = vpop.f32.mrb[0].mxu0
        %v970 = vadd.f32 %v809, %v969
        %971 = vmatprep.mubr.f32.mxu0 %v629
        %972 = vmatmul.mubr.f32.gmra.mrb[0].mxu0 %v628
        %v973 = vpop.f32.mrb[0].mxu0
        %v974 = vadd.f32 %v813, %v973
        %v975 = vpop.f32.mrb[0].mxu0
        %v976 = vadd.f32 %v815, %v975
        %977 = vmatprep.mubr.f32.mxu0 %v637
        %978 = vmatmul.mubr.f32.gmra.mrb[0].mxu0 %v636
        %v979 = vpop.f32.mrb[0].mxu0
        %v980 = vadd.f32 %v819, %v979
        %v981 = vpop.f32.mrb[0].mxu0
        %v982 = vadd.f32 %v821, %v981
        %983 = vmatprep.mubr.f32.mxu0 %v645
        %984 = vmatmul.mubr.f32.gmra.mrb[0].mxu0 %v644
        %v985 = vpop.f32.mrb[0].mxu0
        %v986 = vadd.f32 %v825, %v985
        %v987 = vpop.f32.mrb[0].mxu0
        %v988 = vadd.f32 %v827, %v987
        %989 = vmatprep.mubr.f32.mxu0 %v653
        %990 = vmatmul.mubr.f32.gmra.mrb[0].mxu0 %v652
        %v991 = vpop.f32.mrb[0].mxu0
        %v992 = vadd.f32 %v831, %v991
        %v993 = vpop.f32.mrb[0].mxu0
        %v994 = vadd.f32 %v833, %v993
        %995 = vmatprep.mubr.f32.mxu0 %v661
        %996 = vmatmul.mubr.f32.gmra.mrb[0].mxu0 %v660
        %v997 = vpop.f32.mrb[0].mxu0
        %v998 = vadd.f32 %v837, %v997
        %v999 = vpop.f32.mrb[0].mxu0
        %v1000 = vadd.f32 %v839, %v999
        %1001 = vmatprep.mubr.f32.mxu0 %v669
        %1002 = vmatmul.mubr.f32.gmra.mrb[0].mxu0 %v668
        %v1003 = vpop.f32.mrb[0].mxu0
        %v1004 = vadd.f32 %v843, %v1003
        %v1005 = vpop.f32.mrb[0].mxu0
        %v1006 = vadd.f32 %v845, %v1005
        %1007 = vdwg.mxu0
        %1008 = vmatprep.subr.mxu0 %v419
        %1009 = vmatpush1.msra.mxu0 %v418
        %1010 = vmatprep.subr.mxu0 %v421
        %1011 = vmatpush1.msra.mxu0 %v420
        %1012 = vmatprep.subr.mxu0 %v423
        %1013 = vmatpush1.msra.mxu0 %v422
        %1014 = vmatprep.subr.mxu0 %v425
        %1015 = vmatpush1.msra.mxu0 %v424
        %1016 = vmatprep.subr.mxu0 %v427
        %1017 = vmatpush1.msra.mxu0 %v426
        %1018 = vmatprep.subr.mxu0 %v429
        %1019 = vmatpush1.msra.mxu0 %v428
        %1020 = vmatprep.subr.mxu0 %v431
        %1021 = vmatpush1.msra.mxu0 %v430
        %1022 = vmatprep.subr.mxu0 %v433
        %1023 = vmatpush1.msra.mxu0 %v432
        %1024 = vmatprep.subr.mxu0 %v435
        %1025 = vmatpush1.msra.mxu0 %v434
        %1026 = vmatprep.subr.mxu0 %v437
        %1027 = vmatpush1.msra.mxu0 %v436
        %1028 = vmatprep.subr.mxu0 %v439
        %1029 = vmatpush1.msra.mxu0 %v438
        %1030 = vmatprep.subr.mxu0 %v441
        %1031 = vmatpush1.msra.mxu0 %v440
        %1032 = vmatprep.subr.mxu0 %v443
        %1033 = vmatpush1.msra.mxu0 %v442
        %1034 = vmatprep.subr.mxu0 %v445
        %1035 = vmatpush1.msra.mxu0 %v444
        %1036 = vmatprep.subr.mxu0 %v447
        %1037 = vmatpush1.msra.mxu0 %v446
        %1038 = vmatprep.subr.mxu0 %v449
        %1039 = vmatpush1.msra.mxu0 %v448
        %1040 = vmatprep.subr.mxu0 %v451
        %1041 = vmatpush1.msra.mxu0 %v450
        %1042 = vmatprep.subr.mxu0 %v453
        %1043 = vmatpush1.msra.mxu0 %v452
        %1044 = vmatprep.subr.mxu0 %v455
        %1045 = vmatpush1.msra.mxu0 %v454
        %1046 = vmatprep.subr.mxu0 %v457
        %1047 = vmatpush1.msra.mxu0 %v456
        %1048 = vmatprep.subr.mxu0 %v459
        %1049 = vmatpush1.msra.mxu0 %v458
        %1050 = vmatprep.subr.mxu0 %v461
        %1051 = vmatpush1.msra.mxu0 %v460
        %1052 = vmatprep.subr.mxu0 %v463
        %1053 = vmatpush1.msra.mxu0 %v462
        %1054 = vmatprep.subr.mxu0 %v465
        %1055 = vmatpush1.msra.mxu0 %v464
        %1056 = vmatprep.subr.mxu0 %v467
        %1057 = vmatpush1.msra.mxu0 %v466
        %1058 = vmatprep.subr.mxu0 %v469
        %1059 = vmatpush1.msra.mxu0 %v468
        %1060 = vmatprep.subr.mxu0 %v471
        %1061 = vmatpush1.msra.mxu0 %v470
        %1062 = vmatprep.subr.mxu0 %v473
        %1063 = vmatpush1.msra.mxu0 %v472
        %1064 = vmatprep.subr.mxu0 %v475
        %1065 = vmatpush1.msra.mxu0 %v474
        %1066 = vmatprep.subr.mxu0 %v477
        %1067 = vmatpush1.msra.mxu0 %v476
        %1068 = vmatprep.subr.mxu0 %v479
        %1069 = vmatpush1.msra.mxu0 %v478
        %1070 = vmatprep.subr.mxu0 %v481
        %1071 = vmatpush1.msra.mxu0 %v480
        %1072 = vmatprep.mubr.f32.mxu0 %v551
        %1073 = vmatmul.mubr.f32.gmra.mrb[0].mxu0 %v550
        %v1074 = vpop.f32.mrb[0].mxu0
        %v1075 = vadd.f32 %v914, %v1074
        %v1076 = vpop.f32.mrb[0].mxu0
        %v1077 = vadd.f32 %v916, %v1076
        %1078 = vmatprep.mubr.f32.mxu0 %v559
        %1079 = vmatmul.mubr.f32.gmra.mrb[0].mxu0 %v558
        %v1080 = vpop.f32.mrb[0].mxu0
        %v1081 = vadd.f32 %v920, %v1080
        %v1082 = vpop.f32.mrb[0].mxu0
        %v1083 = vadd.f32 %v922, %v1082
        %1084 = vmatprep.mubr.f32.mxu0 %v567
        %1085 = vmatmul.mubr.f32.gmra.mrb[0].mxu0 %v566
        %v1086 = vpop.f32.mrb[0].mxu0
        %v1087 = vadd.f32 %v926, %v1086
        %v1088 = vpop.f32.mrb[0].mxu0
        %v1089 = vadd.f32 %v928, %v1088
        %1090 = vmatprep.mubr.f32.mxu0 %v575
        %1091 = vmatmul.mubr.f32.gmra.mrb[0].mxu0 %v574
        %v1092 = vpop.f32.mrb[0].mxu0
        %v1093 = vadd.f32 %v932, %v1092
        %v1094 = vpop.f32.mrb[0].mxu0
        %v1095 = vadd.f32 %v934, %v1094
        %1096 = vmatprep.mubr.f32.mxu0 %v583
        %1097 = vmatmul.mubr.f32.gmra.mrb[0].mxu0 %v582
        %v1098 = vpop.f32.mrb[0].mxu0
        %v1099 = vadd.f32 %v938, %v1098
        %v1100 = vpop.f32.mrb[0].mxu0
        %v1101 = vadd.f32 %v940, %v1100
        %1102 = vmatprep.mubr.f32.mxu0 %v591
        %1103 = vmatmul.mubr.f32.gmra.mrb[0].mxu0 %v590
        %v1104 = vpop.f32.mrb[0].mxu0
        %v1105 = vadd.f32 %v944, %v1104
        %v1106 = vpop.f32.mrb[0].mxu0
        %v1107 = vadd.f32 %v946, %v1106
        %1108 = vmatprep.mubr.f32.mxu0 %v599
        %1109 = vmatmul.mubr.f32.gmra.mrb[0].mxu0 %v598
        %v1110 = vpop.f32.mrb[0].mxu0
        %v1111 = vadd.f32 %v950, %v1110
        %v1112 = vpop.f32.mrb[0].mxu0
        %v1113 = vadd.f32 %v952, %v1112
        %1114 = vmatprep.mubr.f32.mxu0 %v607
        %1115 = vmatmul.mubr.f32.gmra.mrb[0].mxu0 %v606
        %v1116 = vpop.f32.mrb[0].mxu0
        %v1117 = vadd.f32 %v956, %v1116
        %v1118 = vpop.f32.mrb[0].mxu0
        %v1119 = vadd.f32 %v958, %v1118
        %1120 = vmatprep.mubr.f32.mxu0 %v615
        %1121 = vmatmul.mubr.f32.gmra.mrb[0].mxu0 %v614
        %v1122 = vpop.f32.mrb[0].mxu0
        %v1123 = vadd.f32 %v962, %v1122
        %v1124 = vpop.f32.mrb[0].mxu0
        %v1125 = vadd.f32 %v964, %v1124
        %1126 = vmatprep.mubr.f32.mxu0 %v623
        %1127 = vmatmul.mubr.f32.gmra.mrb[0].mxu0 %v622
        %v1128 = vpop.f32.mrb[0].mxu0
        %v1129 = vadd.f32 %v968, %v1128
        %v1130 = vpop.f32.mrb[0].mxu0
        %v1131 = vadd.f32 %v970, %v1130
        %1132 = vmatprep.mubr.f32.mxu0 %v631
        %1133 = vmatmul.mubr.f32.gmra.mrb[0].mxu0 %v630
        %v1134 = vpop.f32.mrb[0].mxu0
        %v1135 = vadd.f32 %v974, %v1134
        %v1136 = vpop.f32.mrb[0].mxu0
        %v1137 = vadd.f32 %v976, %v1136
        %1138 = vmatprep.mubr.f32.mxu0 %v639
        %1139 = vmatmul.mubr.f32.gmra.mrb[0].mxu0 %v638
        %v1140 = vpop.f32.mrb[0].mxu0
        %v1141 = vadd.f32 %v980, %v1140
        %v1142 = vpop.f32.mrb[0].mxu0
        %v1143 = vadd.f32 %v982, %v1142
        %1144 = vmatprep.mubr.f32.mxu0 %v647
        %1145 = vmatmul.mubr.f32.gmra.mrb[0].mxu0 %v646
        %v1146 = vpop.f32.mrb[0].mxu0
        %v1147 = vadd.f32 %v986, %v1146
        %v1148 = vpop.f32.mrb[0].mxu0
        %v1149 = vadd.f32 %v988, %v1148
        %1150 = vmatprep.mubr.f32.mxu0 %v655
        %1151 = vmatmul.mubr.f32.gmra.mrb[0].mxu0 %v654
        %v1152 = vpop.f32.mrb[0].mxu0
        %v1153 = vadd.f32 %v992, %v1152
        %v1154 = vpop.f32.mrb[0].mxu0
        %v1155 = vadd.f32 %v994, %v1154
        %1156 = vmatprep.mubr.f32.mxu0 %v663
        %1157 = vmatmul.mubr.f32.gmra.mrb[0].mxu0 %v662
        %v1158 = vpop.f32.mrb[0].mxu0
        %v1159 = vadd.f32 %v998, %v1158
        %v1160 = vpop.f32.mrb[0].mxu0
        %v1161 = vadd.f32 %v1000, %v1160
        %1162 = vmatprep.mubr.f32.mxu0 %v671
        %1163 = vmatmul.mubr.f32.gmra.mrb[0].mxu0 %v670
        %v1164 = vpop.f32.mrb[0].mxu0
        %v1165 = vadd.f32 %v1004, %v1164
        %v1166 = vpop.f32.mrb[0].mxu0
        %v1167 = vadd.f32 %v1006, %v1166
        %1168 = vdwg.mxu0
        %1169 = vmatprep.subr.mxu0 %v483
        %1170 = vmatpush1.msra.mxu0 %v482
        %1171 = vmatprep.subr.mxu0 %v485
        %1172 = vmatpush1.msra.mxu0 %v484
        %1173 = vmatprep.subr.mxu0 %v487
        %1174 = vmatpush1.msra.mxu0 %v486
        %1175 = vmatprep.subr.mxu0 %v489
        %1176 = vmatpush1.msra.mxu0 %v488
        %1177 = vmatprep.subr.mxu0 %v491
        %1178 = vmatpush1.msra.mxu0 %v490
        %1179 = vmatprep.subr.mxu0 %v493
        %1180 = vmatpush1.msra.mxu0 %v492
        %1181 = vmatprep.subr.mxu0 %v495
        %1182 = vmatpush1.msra.mxu0 %v494
        %1183 = vmatprep.subr.mxu0 %v497
        %1184 = vmatpush1.msra.mxu0 %v496
        %1185 = vmatprep.subr.mxu0 %v499
        %1186 = vmatpush1.msra.mxu0 %v498
        %1187 = vmatprep.subr.mxu0 %v501
        %1188 = vmatpush1.msra.mxu0 %v500
        %1189 = vmatprep.subr.mxu0 %v503
        %1190 = vmatpush1.msra.mxu0 %v502
        %1191 = vmatprep.subr.mxu0 %v505
        %1192 = vmatpush1.msra.mxu0 %v504
        %1193 = vmatprep.subr.mxu0 %v507
        %1194 = vmatpush1.msra.mxu0 %v506
        %1195 = vmatprep.subr.mxu0 %v509
        %1196 = vmatpush1.msra.mxu0 %v508
        %1197 = vmatprep.subr.mxu0 %v511
        %1198 = vmatpush1.msra.mxu0 %v510
        %1199 = vmatprep.subr.mxu0 %v513
        %1200 = vmatpush1.msra.mxu0 %v512
        %1201 = vmatprep.subr.mxu0 %v515
        %1202 = vmatpush1.msra.mxu0 %v514
        %1203 = vmatprep.subr.mxu0 %v517
        %1204 = vmatpush1.msra.mxu0 %v516
        %1205 = vmatprep.subr.mxu0 %v519
        %1206 = vmatpush1.msra.mxu0 %v518
        %1207 = vmatprep.subr.mxu0 %v521
        %1208 = vmatpush1.msra.mxu0 %v520
        %1209 = vmatprep.subr.mxu0 %v523
        %1210 = vmatpush1.msra.mxu0 %v522
        %1211 = vmatprep.subr.mxu0 %v525
        %1212 = vmatpush1.msra.mxu0 %v524
        %1213 = vmatprep.subr.mxu0 %v527
        %1214 = vmatpush1.msra.mxu0 %v526
        %1215 = vmatprep.subr.mxu0 %v529
        %1216 = vmatpush1.msra.mxu0 %v528
        %1217 = vmatprep.subr.mxu0 %v531
        %1218 = vmatpush1.msra.mxu0 %v530
        %1219 = vmatprep.subr.mxu0 %v533
        %1220 = vmatpush1.msra.mxu0 %v532
        %1221 = vmatprep.subr.mxu0 %v535
        %1222 = vmatpush1.msra.mxu0 %v534
        %1223 = vmatprep.subr.mxu0 %v537
        %1224 = vmatpush1.msra.mxu0 %v536
        %1225 = vmatprep.subr.mxu0 %v539
        %1226 = vmatpush1.msra.mxu0 %v538
        %1227 = vmatprep.subr.mxu0 %v541
        %1228 = vmatpush1.msra.mxu0 %v540
        %1229 = vmatprep.subr.mxu0 %v543
        %1230 = vmatpush1.msra.mxu0 %v542
        %1231 = vmatprep.subr.mxu0 %v545
        %1232 = vmatpush1.msra.mxu0 %v544
        %1233 = vmatprep.mubr.f32.mxu0 %v553
        %1234 = vmatmul.mubr.f32.gmra.mrb[0].mxu0 %v552
        %v1235 = vpop.f32.mrb[0].mxu0
        %v1236 = vadd.f32 %v1075, %v1235
        %v1237 = vpop.f32.mrb[0].mxu0
        %v1238 = vadd.f32 %v1077, %v1237
        %1239 = vmatprep.mubr.f32.mxu0 %v561
        %1240 = vmatmul.mubr.f32.gmra.mrb[0].mxu0 %v560
        %v1241 = vpop.f32.mrb[0].mxu0
        %v1242 = vadd.f32 %v1081, %v1241
        %v1243 = vpop.f32.mrb[0].mxu0
        %v1244 = vadd.f32 %v1083, %v1243
        %1245 = vmatprep.mubr.f32.mxu0 %v569
        %1246 = vmatmul.mubr.f32.gmra.mrb[0].mxu0 %v568
        %v1247 = vpop.f32.mrb[0].mxu0
        %v1248 = vadd.f32 %v1087, %v1247
        %v1249 = vpop.f32.mrb[0].mxu0
        %v1250 = vadd.f32 %v1089, %v1249
        %1251 = vmatprep.mubr.f32.mxu0 %v577
        %1252 = vmatmul.mubr.f32.gmra.mrb[0].mxu0 %v576
        %v1253 = vpop.f32.mrb[0].mxu0
        %v1254 = vadd.f32 %v1093, %v1253
        %v1255 = vpop.f32.mrb[0].mxu0
        %v1256 = vadd.f32 %v1095, %v1255
        %1257 = vmatprep.mubr.f32.mxu0 %v585
        %1258 = vmatmul.mubr.f32.gmra.mrb[0].mxu0 %v584
        %v1259 = vpop.f32.mrb[0].mxu0
        %v1260 = vadd.f32 %v1099, %v1259
        %v1261 = vpop.f32.mrb[0].mxu0
        %v1262 = vadd.f32 %v1101, %v1261
        %1263 = vmatprep.mubr.f32.mxu0 %v593
        %1264 = vmatmul.mubr.f32.gmra.mrb[0].mxu0 %v592
        %v1265 = vpop.f32.mrb[0].mxu0
        %v1266 = vadd.f32 %v1105, %v1265
        %v1267 = vpop.f32.mrb[0].mxu0
        %v1268 = vadd.f32 %v1107, %v1267
        %1269 = vmatprep.mubr.f32.mxu0 %v601
        %1270 = vmatmul.mubr.f32.gmra.mrb[0].mxu0 %v600
        %v1271 = vpop.f32.mrb[0].mxu0
        %v1272 = vadd.f32 %v1111, %v1271
        %v1273 = vpop.f32.mrb[0].mxu0
        %v1274 = vadd.f32 %v1113, %v1273
        %1275 = vmatprep.mubr.f32.mxu0 %v609
        %1276 = vmatmul.mubr.f32.gmra.mrb[0].mxu0 %v608
        %v1277 = vpop.f32.mrb[0].mxu0
        %v1278 = vadd.f32 %v1117, %v1277
        %v1279 = vpop.f32.mrb[0].mxu0
        %v1280 = vadd.f32 %v1119, %v1279
        %1281 = vmatprep.mubr.f32.mxu0 %v617
        %1282 = vmatmul.mubr.f32.gmra.mrb[0].mxu0 %v616
        %v1283 = vpop.f32.mrb[0].mxu0
        %v1284 = vadd.f32 %v1123, %v1283
        %v1285 = vpop.f32.mrb[0].mxu0
        %v1286 = vadd.f32 %v1125, %v1285
        %1287 = vmatprep.mubr.f32.mxu0 %v625
        %1288 = vmatmul.mubr.f32.gmra.mrb[0].mxu0 %v624
        %v1289 = vpop.f32.mrb[0].mxu0
        %v1290 = vadd.f32 %v1129, %v1289
        %v1291 = vpop.f32.mrb[0].mxu0
        %v1292 = vadd.f32 %v1131, %v1291
        %1293 = vmatprep.mubr.f32.mxu0 %v633
        %1294 = vmatmul.mubr.f32.gmra.mrb[0].mxu0 %v632
        %v1295 = vpop.f32.mrb[0].mxu0
        %v1296 = vadd.f32 %v1135, %v1295
        %v1297 = vpop.f32.mrb[0].mxu0
        %v1298 = vadd.f32 %v1137, %v1297
        %1299 = vmatprep.mubr.f32.mxu0 %v641
        %1300 = vmatmul.mubr.f32.gmra.mrb[0].mxu0 %v640
        %v1301 = vpop.f32.mrb[0].mxu0
        %v1302 = vadd.f32 %v1141, %v1301
        %v1303 = vpop.f32.mrb[0].mxu0
        %v1304 = vadd.f32 %v1143, %v1303
        %1305 = vmatprep.mubr.f32.mxu0 %v649
        %1306 = vmatmul.mubr.f32.gmra.mrb[0].mxu0 %v648
        %v1307 = vpop.f32.mrb[0].mxu0
        %v1308 = vadd.f32 %v1147, %v1307
        %v1309 = vpop.f32.mrb[0].mxu0
        %v1310 = vadd.f32 %v1149, %v1309
        %1311 = vmatprep.mubr.f32.mxu0 %v657
        %1312 = vmatmul.mubr.f32.gmra.mrb[0].mxu0 %v656
        %v1313 = vpop.f32.mrb[0].mxu0
        %v1314 = vadd.f32 %v1153, %v1313
        %v1315 = vpop.f32.mrb[0].mxu0
        %v1316 = vadd.f32 %v1155, %v1315
        %1317 = vmatprep.mubr.f32.mxu0 %v665
        %1318 = vmatmul.mubr.f32.gmra.mrb[0].mxu0 %v664
        %v1319 = vpop.f32.mrb[0].mxu0
        %v1320 = vadd.f32 %v1159, %v1319
        %v1321 = vpop.f32.mrb[0].mxu0
        %v1322 = vadd.f32 %v1161, %v1321
        %1323 = vmatprep.mubr.f32.mxu0 %v673
        %1324 = vmatmul.mubr.f32.gmra.mrb[0].mxu0 %v672
        %v1325 = vpop.f32.mrb[0].mxu0
        %v1326 = vadd.f32 %v1165, %v1325
        %v1327 = vpop.f32.mrb[0].mxu0
        %v1328 = vadd.f32 %v1167, %v1327
        %1329 = vdwg.mxu0
        %v1330 = vtanh.pop %v1236
        %v1331 = vtanh.pop %v1238
        %v1332 = vtanh.pop %v1242
        %v1333 = vtanh.pop %v1244
        %v1334 = vtanh.pop %v1248
        %v1335 = vtanh.pop %v1250
        %v1336 = vtanh.pop %v1254
        %v1337 = vtanh.pop %v1256
        %v1338 = vtanh.pop %v1260
        %v1339 = vtanh.pop %v1262
        %v1340 = vtanh.pop %v1266
        %v1341 = vtanh.pop %v1268
        %v1342 = vtanh.pop %v1272
        %v1343 = vtanh.pop %v1274
        %v1344 = vtanh.pop %v1278
        %v1345 = vtanh.pop %v1280
        %v1346 = vtanh.pop %v1284
        %v1347 = vtanh.pop %v1286
        %v1348 = vtanh.pop %v1290
        %v1349 = vtanh.pop %v1292
        %v1350 = vtanh.pop %v1296
        %v1351 = vtanh.pop %v1298
        %v1352 = vtanh.pop %v1302
        %v1353 = vtanh.pop %v1304
        %v1354 = vtanh.pop %v1308
        %v1355 = vtanh.pop %v1310
        %v1356 = vtanh.pop %v1314
        %v1357 = vtanh.pop %v1316
        %v1358 = vtanh.pop %v1320
        %v1359 = vtanh.pop %v1322
        %v1360 = vtanh.pop %v1326
        %v1361 = vtanh.pop %v1328
        %v1362 = vld [vmem:[#allocation8] sm:$0x3]
        %v1364 = vlaneseq
        %v1365 = vshrl.u32 %v1364, 7
        %v1366 = vsub.s32 0, %v1365
        %v1367 = vrot.slane %v1362, %v1366
        %v1368 = vlaneseq
        %v1369 = vshrl.u32 %v1368, 7
        %v1370 = vsub.s32 1, %v1369
        %v1371 = vrot.slane %v1362, %v1370
        %v1374 = vmul.f32 %v1330, %v1367
        %v1375 = vmul.f32 %v1331, %v1371
        %v1376 = vmul.f32 %v1332, %v1367
        %v1377 = vmul.f32 %v1333, %v1371
        %v1378 = vmul.f32 %v1334, %v1367
        %v1379 = vmul.f32 %v1335, %v1371
        %v1380 = vmul.f32 %v1336, %v1367
        %v1381 = vmul.f32 %v1337, %v1371
        %v1382 = vmul.f32 %v1338, %v1367
        %v1383 = vmul.f32 %v1339, %v1371
        %v1384 = vmul.f32 %v1340, %v1367
        %v1385 = vmul.f32 %v1341, %v1371
        %v1386 = vmul.f32 %v1342, %v1367
        %v1387 = vmul.f32 %v1343, %v1371
        %v1388 = vmul.f32 %v1344, %v1367
        %v1389 = vmul.f32 %v1345, %v1371
        %v1390 = vmul.f32 %v1346, %v1367
        %v1391 = vmul.f32 %v1347, %v1371
        %v1392 = vmul.f32 %v1348, %v1367
        %v1393 = vmul.f32 %v1349, %v1371
        %v1394 = vmul.f32 %v1350, %v1367
        %v1395 = vmul.f32 %v1351, %v1371
        %v1396 = vmul.f32 %v1352, %v1367
        %v1397 = vmul.f32 %v1353, %v1371
        %v1398 = vmul.f32 %v1354, %v1367
        %v1399 = vmul.f32 %v1355, %v1371
        %v1400 = vmul.f32 %v1356, %v1367
        %v1401 = vmul.f32 %v1357, %v1371
        %v1402 = vmul.f32 %v1358, %v1367
        %v1403 = vmul.f32 %v1359, %v1371
        %v1404 = vmul.f32 %v1360, %v1367
        %v1405 = vmul.f32 %v1361, %v1371
        %v1406 = vadd.f32 %v1374, %v1375
        %1407 = vadd.xlane.f32.xlu0 %v1406
        %v1408 = vpop.xlane.xlu0 %1407
        %v1409 = vadd.f32 %v1376, %v1377
        %1410 = vadd.xlane.f32.xlu0 %v1409
        %v1411 = vpop.xlane.xlu0 %1410
        %v1412 = vadd.f32 %v1378, %v1379
        %1413 = vadd.xlane.f32.xlu0 %v1412
        %v1414 = vpop.xlane.xlu0 %1413
        %v1415 = vadd.f32 %v1380, %v1381
        %1416 = vadd.xlane.f32.xlu0 %v1415
        %v1417 = vpop.xlane.xlu0 %1416
        %v1418 = vadd.f32 %v1382, %v1383
        %1419 = vadd.xlane.f32.xlu0 %v1418
        %v1420 = vpop.xlane.xlu0 %1419
        %v1421 = vadd.f32 %v1384, %v1385
        %1422 = vadd.xlane.f32.xlu0 %v1421
        %v1423 = vpop.xlane.xlu0 %1422
        %v1424 = vadd.f32 %v1386, %v1387
        %1425 = vadd.xlane.f32.xlu0 %v1424
        %v1426 = vpop.xlane.xlu0 %1425
        %v1427 = vadd.f32 %v1388, %v1389
        %1428 = vadd.xlane.f32.xlu0 %v1427
        %v1429 = vpop.xlane.xlu0 %1428
        %v1430 = vadd.f32 %v1390, %v1391
        %1431 = vadd.xlane.f32.xlu0 %v1430
        %v1432 = vpop.xlane.xlu0 %1431
        %v1433 = vadd.f32 %v1392, %v1393
        %1434 = vadd.xlane.f32.xlu0 %v1433
        %v1435 = vpop.xlane.xlu0 %1434
        %v1436 = vadd.f32 %v1394, %v1395
        %1437 = vadd.xlane.f32.xlu0 %v1436
        %v1438 = vpop.xlane.xlu0 %1437
        %v1439 = vadd.f32 %v1396, %v1397
        %1440 = vadd.xlane.f32.xlu0 %v1439
        %v1441 = vpop.xlane.xlu0 %1440
        %v1442 = vadd.f32 %v1398, %v1399
        %1443 = vadd.xlane.f32.xlu0 %v1442
        %v1444 = vpop.xlane.xlu0 %1443
        %v1445 = vadd.f32 %v1400, %v1401
        %1446 = vadd.xlane.f32.xlu0 %v1445
        %v1447 = vpop.xlane.xlu0 %1446
        %v1448 = vadd.f32 %v1402, %v1403
        %1449 = vadd.xlane.f32.xlu0 %v1448
        %v1450 = vpop.xlane.xlu0 %1449
        %v1451 = vadd.f32 %v1404, %v1405
        %1452 = vadd.xlane.f32.xlu0 %v1451
        %v1453 = vpop.xlane.xlu0 %1452
        %v1454 = vld [vmem:[#allocation2] sm:$0x1]
        %v1456 = vlaneseq
        %v1457 = vshrl.u32 %v1456, 7
        %v1458 = vsub.s32 0, %v1457
        %v1459 = vrot.slane %v1454, %v1458
        %v1461 = vadd.f32 %v1408, %v1459
        %v1462 = vadd.f32 %v1411, %v1459
        %v1463 = vadd.f32 %v1414, %v1459
        %v1464 = vadd.f32 %v1417, %v1459
        %v1465 = vadd.f32 %v1420, %v1459
        %v1466 = vadd.f32 %v1423, %v1459
        %v1467 = vadd.f32 %v1426, %v1459
        %v1468 = vadd.f32 %v1429, %v1459
        %v1469 = vadd.f32 %v1432, %v1459
        %v1470 = vadd.f32 %v1435, %v1459
        %v1471 = vadd.f32 %v1438, %v1459
        %v1472 = vadd.f32 %v1441, %v1459
        %v1473 = vadd.f32 %v1444, %v1459
        %v1474 = vadd.f32 %v1447, %v1459
        %v1475 = vadd.f32 %v1450, %v1459
        %v1476 = vadd.f32 %v1453, %v1459
        %vm1477 = vcmask 7168
        %1478 = vst.msk [vmem:[%s288] sm:$0xff] %vm1477, %v1461
        %1479 = vst.msk [vmem:[%s288 + $0x8] sm:$0xff] %vm1477, %v1462
        %1480 = vst.msk [vmem:[%s288 + $0x10] sm:$0xff] %vm1477, %v1463
        %1481 = vst.msk [vmem:[%s288 + $0x18] sm:$0xff] %vm1477, %v1464
        %1482 = vst.msk [vmem:[%s288 + $0x20] sm:$0xff] %vm1477, %v1465
        %1483 = vst.msk [vmem:[%s288 + $0x28] sm:$0xff] %vm1477, %v1466
        %1484 = vst.msk [vmem:[%s288 + $0x30] sm:$0xff] %vm1477, %v1467
        %1485 = vst.msk [vmem:[%s288 + $0x38] sm:$0xff] %vm1477, %v1468
        %1486 = vst.msk [vmem:[%s288 + $0x40] sm:$0xff] %vm1477, %v1469
        %1487 = vst.msk [vmem:[%s288 + $0x48] sm:$0xff] %vm1477, %v1470
        %1488 = vst.msk [vmem:[%s288 + $0x50] sm:$0xff] %vm1477, %v1471
        %1489 = vst.msk [vmem:[%s288 + $0x58] sm:$0xff] %vm1477, %v1472
        %1490 = vst.msk [vmem:[%s288 + $0x60] sm:$0xff] %vm1477, %v1473
        %1491 = vst.msk [vmem:[%s288 + $0x68] sm:$0xff] %vm1477, %v1474
        %1492 = vst.msk [vmem:[%s288 + $0x70] sm:$0xff] %vm1477, %v1475
        %1493 = vst.msk [vmem:[%s288 + $0x78] sm:$0xff] %vm1477, %v1476
        %s1494 = smul.u32 16, %s23
        %p1495 = scmp.lt.s32.totalorder %s1494, 63
        %s1496 = scalar_select %p1495, %s1494, 63
        %s1497 = smul.addr %s1496, 8
        %s1498 = scalar_lea.vmem %s5, %s1497
        // Predicated region
        $region57: #{tpu_custom_call.1} parent=39 // pred_check
          %p1499 = pneg %p151
        $region58: #{tpu_custom_call.1} parent=39 // pred_check_branch
          %1501 = sbr.rel (%p1499) target = $region60
        $region59: #{tpu_custom_call.1} parent=39 // pred_region
          %s1502 = smul.u32 16, %s23
        $region60: #{tpu_custom_call.1} parent=39 // pred_fallthru
          _
      $region40: #{tpu_custom_call.1} parent=5 // pred_fallthru
        _
      %p1503 = scmp.le.s32.totalorder 2, %s18
      // Predicated region
      $region61: #{tpu_custom_call.1} parent=5 // pred_check
        %p1504 = pneg %p1503
      $region62: #{tpu_custom_call.1} parent=5 // pred_check_branch
        %1506 = sbr.rel (%p1504) target = $region64
      $region63: #{tpu_custom_call.1} parent=5 // pred_region
        %s1507 = ssub.s32 %s18, 2
        // Predicated region
        $region65: #{tpu_custom_call.1} parent=63 // pred_check
          %p1508 = pneg %p157
        $region66: #{tpu_custom_call.1} parent=63 // pred_check_branch
          %1510 = sbr.rel (%p1508) target = $region68
        $region67: #{tpu_custom_call.1} parent=63 // pred_region
          %s1511 = smul.u32 16, %s24
          %p1512 = scmp.lt.s32.totalorder %s1511, 63
          %s1513 = scalar_select %p1512, %s1511, 63
          %s1514 = smul.addr %s1513, 8
          %s1515 = scalar_lea.vmem %s5, %s1514
        $region68: #{tpu_custom_call.1} parent=63 // pred_fallthru
          _
      $region64: #{tpu_custom_call.1} parent=5 // pred_fallthru
        _
    $region6: #{tpu_custom_call.1} parent=1 // loop_footer
      %s22 = sadd.s32 1, %s18
    $region7: #{tpu_custom_call.1} parent=1 // loop_footer_branch
      %17 = sbr.rel target = $region3
    $region8: #{tpu_custom_call.1} parent=1 // loop_exit
      _
    %1516 = vsyncpa [#allocation4], 1
    %s1517 = scalar_lea.sflag [#allocation4], 1
    %1518 = vsyncpa %s1517, 1
    %1519 = vsyncpa [#allocation6], 1
    %1520 = vsyncpa [#allocation9], 1

</llo_original>
